<compile_context>
chip_gen: v7x
topology: tpu7x:2x2x1
jax: 0.10.0
libtpu: 0.0.40
codegen_flags: <defaults>
</compile_context>

<pallas_src>
from functools import partial

import jax
import jax.numpy as jnp
from jax.experimental import pallas as pl
from jax.experimental.pallas import tpu as pltpu


def mesh_conv_kernel(gi_ref, x_ref, w_ref, b_ref, o_ref, *, k):
    """Per (batch, face-tile): fused one-ring gather + symmetric pooling + (1,k) conv.

    gi_ref: (1, k, TF) int32   neighbor indices into the padded face axis
    x_ref : (1, C, F+1) f32    full padded face features for this batch (resident)
    w_ref : (k, C_out, C) f32  per-neighbor conv weights
    b_ref : (C_out, 1) f32
    o_ref : (1, C_out, TF) f32 faces on lanes -> unmasked stores
    """
    Fp1 = x_ref.shape[2]
    TF = o_ref.shape[2]

    xb = x_ref[0]                                   # (C, F+1), faces on lanes
    gi = gi_ref[0]                                  # (k, TF)

    # One-hot gather per neighbor on the MXU: f_j[c, t] = xb[c, gi[j, t]].
    # (Exact in f32 since the one-hot is 0/1; out-of-range indices -> zeros.)
    row_iota = jax.lax.broadcasted_iota(jnp.int32, (Fp1, TF), 0)
    f = []
    for j in range(k):
        onehot = (gi[j:j + 1, :] == row_iota).astype(jnp.float32)   # (F+1, TF)
        f.append(jnp.dot(xb, onehot, preferred_element_type=jnp.float32))  # (C, TF)
    f0, f1, f2, f3, f4 = f

    # Symmetric functions from create_GeMM (1-ring order invariance).
    g = (f0, f1 + f3, f2 + f4, jnp.abs(f1 - f3), jnp.abs(f2 - f4))

    # Conv2d(C, O, kernel=(1, k)) as k accumulated per-neighbor matmuls;
    # bias folded into the first accumulation (no separate broadcast+add).
    acc = jnp.dot(w_ref[0], g[0], preferred_element_type=jnp.float32) + b_ref[...]
    for j in range(1, k):
        acc = acc + jnp.dot(w_ref[j], g[j], preferred_element_type=jnp.float32)

    o_ref[0] = acc                                   # (C_out, TF), lane-dense


def pad_gemm(gemm_faces_list, faces_counts, xsz):
    """pad_gemm + batch concat: returns float (B, xsz, 5)."""
    Gs = []
    for gf, fc in zip(gemm_faces_list, faces_counts):
        g = jnp.concatenate(
            [jnp.arange(fc, dtype=jnp.float32)[:, None], gf.astype(jnp.float32)],
            axis=1,
        )                                            # (fc, 5)
        g = jnp.pad(g, ((0, xsz - fc), (0, 0)))      # constant 0 pad, like F.pad
        Gs.append(g[None])
    return jnp.concatenate(Gs, axis=0)               # (B, xsz, 5)


def _round_up(n, m):
    return ((n + m - 1) // m) * m


def mesh_conv_forward(x, gemm_faces_list, faces_counts, weight, bias, k=5, tf=512):
    """x: (B, C_in, F, 1) PyTorch-style.  Returns (B, C_out, F, 1)."""
    assert k == 5, "create_GeMM's symmetric pooling is defined for k == 5"
    B, C, F, _ = x.shape
    O = weight.shape[0]

    # Face tile: multiple of 128 (lane-dense), capped at `tf`; pad F up to it.
    TF = min(tf, _round_up(F, 128))
    F_pad = _round_up(F, TF)
    nT = F_pad // TF

    # Gemm indices -> (B, k, F_pad) int32, +1 shift for the zero-pad column.
    # NOTE: as in original MeshCNN, when faces_count < F the zero-padded Gemm
    # rows gather real face 0's features; those rows are ignored downstream.
    # Faces padded beyond F index the zero column -> output bias -> sliced off.
    G = pad_gemm(gemm_faces_list, faces_counts, F)                 # (B, F, 5)
    gi = jnp.transpose((G + 1.0).astype(jnp.int32), (0, 2, 1))     # (B, k, F)
    gi = jnp.pad(gi, ((0, 0), (0, 0), (0, F_pad - F)))             # (B, k, F_pad)

    # Zero-pad the face (lane) axis at column 0; faces already on last axis.
    xs = x[..., 0].astype(jnp.float32)                             # (B, C, F)
    x_pad = jnp.concatenate([jnp.zeros((B, C, 1), jnp.float32), xs], axis=2)

    # Per-neighbor weights (k, O, C): w[j, o, c] = W[o, c, 0, j].
    w = jnp.transpose(weight[:, :, 0, :], (2, 0, 1)).astype(jnp.float32)
    b = bias.reshape(O, 1).astype(jnp.float32)

    out = pl.pallas_call(
        partial(mesh_conv_kernel, k=k),
        out_shape=jax.ShapeDtypeStruct((B, O, F_pad), jnp.float32),
        grid_spec=pltpu.PrefetchScalarGridSpec(
            num_scalar_prefetch=0,
            grid=(B, nT),
            in_specs=[
                pl.BlockSpec((1, k, TF), lambda bb, t: (bb, 0, t)),
                pl.BlockSpec((1, C, F + 1), lambda bb, t: (bb, 0, 0)),  # resident per batch
                pl.BlockSpec((k, O, C), lambda bb, t: (0, 0, 0)),
                pl.BlockSpec((O, 1), lambda bb, t: (0, 0)),
            ],
            out_specs=pl.BlockSpec((1, O, TF), lambda bb, t: (bb, 0, t)),
        ),
        compiler_params=pltpu.CompilerParams(
            dimension_semantics=("parallel", "parallel"),
            vmem_limit_bytes=32 * 1024 * 1024,   # safe on v5e/v6e/v7x
        ),
    )(gi, x_pad, w, b)

    # Already channels-then-faces: just drop face padding and restore width-1 dim.
    return out[:, :, :F, None]


def mesh_conv_ref(x, G, weight, bias, k=5):
    """Pure-JAX reference of the same (well-defined) forward, for verification."""
    B, C, F, _ = x.shape
    xs = x[..., 0]
    x_pad = jnp.concatenate([jnp.zeros((B, C, 1), xs.dtype), xs], axis=2)   # (B,C,F+1)
    Gi = (G + 1.0).astype(jnp.int32)                                        # (B,F,5)
    f = jax.vmap(lambda xp, gi: xp[:, gi])(x_pad, Gi)                       # (B,C,F,5)
    g = jnp.stack(
        [f[..., 0], f[..., 1] + f[..., 3], f[..., 2] + f[..., 4],
         jnp.abs(f[..., 1] - f[..., 3]), jnp.abs(f[..., 2] - f[..., 4])],
        axis=-1,
    )                                                                       # (B,C,F,5)
    out = jnp.einsum("bcfj,ocj->bof", g, weight[:, :, 0, :]) + bias[None, :, None]
    return out[..., None]


if __name__ == "__main__":
    key = jax.random.PRNGKey(0)
    B, C_in, C_out, F, k = 2, 4, 8, 200, 5

    k1, k2, k3, k4 = jax.random.split(key, 4)
    x = jax.random.normal(k1, (B, C_in, F, 1), dtype=jnp.float32)
    # Deterministic "Conv2d" parameters (shapes from nn.Conv2d(C_in, C_out, (1, k))).
    weight = 0.1 * jax.random.normal(k2, (C_out, C_in, 1, k), dtype=jnp.float32)
    bias = 0.1 * jax.random.normal(k3, (C_out,), dtype=jnp.float32)
    # Synthetic mesh structures: gemm_faces is (faces_count, 4) of neighbor ids.
    gemm_faces = [
        jax.random.randint(jax.random.fold_in(k4, bb), (F, 4), 0, F) for bb in range(B)
    ]
    faces_counts = [F] * B

    # tf=128 -> TF=128, F_pad=256, two face tiles: exercises tiling + face padding.
    out = mesh_conv_forward(x, gemm_faces, faces_counts, weight, bias, k=k, tf=128)
    out = jax.block_until_ready(out)

    ref = mesh_conv_ref(x, pad_gemm(gemm_faces, faces_counts, F), weight, bias, k=k)
    assert out.shape == (B, C_out, F, 1), out.shape
    assert jnp.allclose(out, ref, atol=1e-4, rtol=1e-4), float(jnp.max(jnp.abs(out - ref)))

    print("KERNEL_OK")
</pallas_src>

<mosaic_0001>
module attributes {stable_mosaic.version = 11 : i64} {
  func.func @mesh_conv_kernel(%arg0: i32, %arg1: i32, %arg2: memref<1x5x128xi32, #tpu.memory_space<vmem>>, %arg3: memref<1x4x201xf32, #tpu.memory_space<vmem>>, %arg4: memref<5x8x4xf32, #tpu.memory_space<vmem>>, %arg5: memref<8x1xf32, #tpu.memory_space<vmem>>, %arg6: memref<1x8x128xf32, #tpu.memory_space<vmem>>) attributes {dimension_semantics = [#tpu.dimension_semantics<parallel>, #tpu.dimension_semantics<parallel>], iteration_bounds = array<i64: 2, 2>, scalar_prefetch = 0 : i64, scratch_operands = 0 : i64, tpu.core_type = #tpu.core_type<tc>, window_params = [{transform_indices = @transform_0, window_bounds = array<i64: 1, 5, 128>}, {transform_indices = @transform_1, window_bounds = array<i64: 1, 4, 201>}, {pipeline_mode = #tpu.pipeline_mode<synchronous>, transform_indices = @transform_2, window_bounds = array<i64: 5, 8, 4>}, {pipeline_mode = #tpu.pipeline_mode<synchronous>, transform_indices = @transform_3, window_bounds = array<i64: 8, 1>}, {transform_indices = @transform_4, window_bounds = array<i64: 1, 8, 128>}]} {
    %c0 = arith.constant 0 : index
    %c0_0 = arith.constant 0 : index
    %c0_1 = arith.constant 0 : index
    %0 = vector.load %arg3[%c0, %c0_0, %c0_1] : memref<1x4x201xf32, #tpu.memory_space<vmem>>, vector<1x4x201xf32>
    %1 = vector.shape_cast %0 : vector<1x4x201xf32> to vector<4x201xf32>
    %c0_2 = arith.constant 0 : index
    %c0_3 = arith.constant 0 : index
    %c0_4 = arith.constant 0 : index
    %2 = vector.load %arg2[%c0_2, %c0_3, %c0_4] : memref<1x5x128xi32, #tpu.memory_space<vmem>>, vector<1x5x128xi32>
    %3 = vector.shape_cast %2 : vector<1x5x128xi32> to vector<5x128xi32>
    %4 = tpu.iota {dimensions = array<i32: 0>} : vector<201x128xi32>
    %5 = vector.extract_strided_slice %3 {offsets = [0, 0], sizes = [1, 128], strides = [1, 1]} : vector<5x128xi32> to vector<1x128xi32>
    %6 = vector.broadcast %5 : vector<1x128xi32> to vector<201x128xi32>
    %7 = arith.cmpi eq, %6, %4 : vector<201x128xi32>
    %8 = arith.extui %7 : vector<201x128xi1> to vector<201x128xi32>
    %9 = arith.sitofp %8 : vector<201x128xi32> to vector<201x128xf32>
    %cst = arith.constant dense<0.000000e+00> : vector<4x128xf32>
    %10 = tpu.matmul %1, %9, %cst {dimension_numbers = #tpu.dot_dimension_numbers<[1], [0], [0], [1], [0, 0, 1, 1], [], []>} : vector<4x201xf32>, vector<201x128xf32>, vector<4x128xf32> -> vector<4x128xf32>
    %11 = vector.extract_strided_slice %3 {offsets = [1, 0], sizes = [1, 128], strides = [1, 1]} : vector<5x128xi32> to vector<1x128xi32>
    %12 = vector.broadcast %11 : vector<1x128xi32> to vector<201x128xi32>
    %13 = arith.cmpi eq, %12, %4 : vector<201x128xi32>
    %14 = arith.extui %13 : vector<201x128xi1> to vector<201x128xi32>
    %15 = arith.sitofp %14 : vector<201x128xi32> to vector<201x128xf32>
    %cst_5 = arith.constant dense<0.000000e+00> : vector<4x128xf32>
    %16 = tpu.matmul %1, %15, %cst_5 {dimension_numbers = #tpu.dot_dimension_numbers<[1], [0], [0], [1], [0, 0, 1, 1], [], []>} : vector<4x201xf32>, vector<201x128xf32>, vector<4x128xf32> -> vector<4x128xf32>
    %17 = vector.extract_strided_slice %3 {offsets = [2, 0], sizes = [1, 128], strides = [1, 1]} : vector<5x128xi32> to vector<1x128xi32>
    %18 = vector.broadcast %17 : vector<1x128xi32> to vector<201x128xi32>
    %19 = arith.cmpi eq, %18, %4 : vector<201x128xi32>
    %20 = arith.extui %19 : vector<201x128xi1> to vector<201x128xi32>
    %21 = arith.sitofp %20 : vector<201x128xi32> to vector<201x128xf32>
    %cst_6 = arith.constant dense<0.000000e+00> : vector<4x128xf32>
    %22 = tpu.matmul %1, %21, %cst_6 {dimension_numbers = #tpu.dot_dimension_numbers<[1], [0], [0], [1], [0, 0, 1, 1], [], []>} : vector<4x201xf32>, vector<201x128xf32>, vector<4x128xf32> -> vector<4x128xf32>
    %23 = vector.extract_strided_slice %3 {offsets = [3, 0], sizes = [1, 128], strides = [1, 1]} : vector<5x128xi32> to vector<1x128xi32>
    %24 = vector.broadcast %23 : vector<1x128xi32> to vector<201x128xi32>
    %25 = arith.cmpi eq, %24, %4 : vector<201x128xi32>
    %26 = arith.extui %25 : vector<201x128xi1> to vector<201x128xi32>
    %27 = arith.sitofp %26 : vector<201x128xi32> to vector<201x128xf32>
    %cst_7 = arith.constant dense<0.000000e+00> : vector<4x128xf32>
    %28 = tpu.matmul %1, %27, %cst_7 {dimension_numbers = #tpu.dot_dimension_numbers<[1], [0], [0], [1], [0, 0, 1, 1], [], []>} : vector<4x201xf32>, vector<201x128xf32>, vector<4x128xf32> -> vector<4x128xf32>
    %29 = vector.extract_strided_slice %3 {offsets = [4, 0], sizes = [1, 128], strides = [1, 1]} : vector<5x128xi32> to vector<1x128xi32>
    %30 = vector.broadcast %29 : vector<1x128xi32> to vector<201x128xi32>
    %31 = arith.cmpi eq, %30, %4 : vector<201x128xi32>
    %32 = arith.extui %31 : vector<201x128xi1> to vector<201x128xi32>
    %33 = arith.sitofp %32 : vector<201x128xi32> to vector<201x128xf32>
    %cst_8 = arith.constant dense<0.000000e+00> : vector<4x128xf32>
    %34 = tpu.matmul %1, %33, %cst_8 {dimension_numbers = #tpu.dot_dimension_numbers<[1], [0], [0], [1], [0, 0, 1, 1], [], []>} : vector<4x201xf32>, vector<201x128xf32>, vector<4x128xf32> -> vector<4x128xf32>
    %35 = arith.addf %16, %28 : vector<4x128xf32>
    %36 = arith.addf %22, %34 : vector<4x128xf32>
    %37 = arith.subf %16, %28 : vector<4x128xf32>
    %38 = math.absf %37 : vector<4x128xf32>
    %39 = arith.subf %22, %34 : vector<4x128xf32>
    %40 = math.absf %39 : vector<4x128xf32>
    %c0_9 = arith.constant 0 : index
    %c0_10 = arith.constant 0 : index
    %c0_11 = arith.constant 0 : index
    %41 = vector.load %arg4[%c0_9, %c0_10, %c0_11] : memref<5x8x4xf32, #tpu.memory_space<vmem>>, vector<1x8x4xf32>
    %42 = vector.shape_cast %41 : vector<1x8x4xf32> to vector<8x4xf32>
    %cst_12 = arith.constant dense<0.000000e+00> : vector<8x128xf32>
    %43 = tpu.matmul %42, %10, %cst_12 {dimension_numbers = #tpu.dot_dimension_numbers<[1], [0], [0], [1], [0, 0, 1, 1], [], []>} : vector<8x4xf32>, vector<4x128xf32>, vector<8x128xf32> -> vector<8x128xf32>
    %c0_13 = arith.constant 0 : index
    %c0_14 = arith.constant 0 : index
    %44 = vector.load %arg5[%c0_13, %c0_14] : memref<8x1xf32, #tpu.memory_space<vmem>>, vector<8x1xf32>
    %45 = vector.broadcast %44 : vector<8x1xf32> to vector<8x128xf32>
    %46 = arith.addf %43, %45 : vector<8x128xf32>
    %c1 = arith.constant 1 : index
    %c0_15 = arith.constant 0 : index
    %c0_16 = arith.constant 0 : index
    %47 = vector.load %arg4[%c1, %c0_15, %c0_16] : memref<5x8x4xf32, #tpu.memory_space<vmem>>, vector<1x8x4xf32>
    %48 = vector.shape_cast %47 : vector<1x8x4xf32> to vector<8x4xf32>
    %cst_17 = arith.constant dense<0.000000e+00> : vector<8x128xf32>
    %49 = tpu.matmul %48, %35, %cst_17 {dimension_numbers = #tpu.dot_dimension_numbers<[1], [0], [0], [1], [0, 0, 1, 1], [], []>} : vector<8x4xf32>, vector<4x128xf32>, vector<8x128xf32> -> vector<8x128xf32>
    %50 = arith.addf %46, %49 : vector<8x128xf32>
    %c2 = arith.constant 2 : index
    %c0_18 = arith.constant 0 : index
    %c0_19 = arith.constant 0 : index
    %51 = vector.load %arg4[%c2, %c0_18, %c0_19] : memref<5x8x4xf32, #tpu.memory_space<vmem>>, vector<1x8x4xf32>
    %52 = vector.shape_cast %51 : vector<1x8x4xf32> to vector<8x4xf32>
    %cst_20 = arith.constant dense<0.000000e+00> : vector<8x128xf32>
    %53 = tpu.matmul %52, %36, %cst_20 {dimension_numbers = #tpu.dot_dimension_numbers<[1], [0], [0], [1], [0, 0, 1, 1], [], []>} : vector<8x4xf32>, vector<4x128xf32>, vector<8x128xf32> -> vector<8x128xf32>
    %54 = arith.addf %50, %53 : vector<8x128xf32>
    %c3 = arith.constant 3 : index
    %c0_21 = arith.constant 0 : index
    %c0_22 = arith.constant 0 : index
    %55 = vector.load %arg4[%c3, %c0_21, %c0_22] : memref<5x8x4xf32, #tpu.memory_space<vmem>>, vector<1x8x4xf32>
    %56 = vector.shape_cast %55 : vector<1x8x4xf32> to vector<8x4xf32>
    %cst_23 = arith.constant dense<0.000000e+00> : vector<8x128xf32>
    %57 = tpu.matmul %56, %38, %cst_23 {dimension_numbers = #tpu.dot_dimension_numbers<[1], [0], [0], [1], [0, 0, 1, 1], [], []>} : vector<8x4xf32>, vector<4x128xf32>, vector<8x128xf32> -> vector<8x128xf32>
    %58 = arith.addf %54, %57 : vector<8x128xf32>
    %c4 = arith.constant 4 : index
    %c0_24 = arith.constant 0 : index
    %c0_25 = arith.constant 0 : index
    %59 = vector.load %arg4[%c4, %c0_24, %c0_25] : memref<5x8x4xf32, #tpu.memory_space<vmem>>, vector<1x8x4xf32>
    %60 = vector.shape_cast %59 : vector<1x8x4xf32> to vector<8x4xf32>
    %cst_26 = arith.constant dense<0.000000e+00> : vector<8x128xf32>
    %61 = tpu.matmul %60, %40, %cst_26 {dimension_numbers = #tpu.dot_dimension_numbers<[1], [0], [0], [1], [0, 0, 1, 1], [], []>} : vector<8x4xf32>, vector<4x128xf32>, vector<8x128xf32> -> vector<8x128xf32>
    %62 = arith.addf %58, %61 : vector<8x128xf32>
    %c0_27 = arith.constant 0 : index
    %c0_28 = arith.constant 0 : index
    %c0_29 = arith.constant 0 : index
    %63 = vector.load %arg6[%c0_27, %c0_28, %c0_29] : memref<1x8x128xf32, #tpu.memory_space<vmem>>, vector<1x8x128xf32>
    %64 = vector.shape_cast %63 : vector<1x8x128xf32> to vector<8x128xf32>
    %65 = vector.shape_cast %62 : vector<8x128xf32> to vector<1x8x128xf32>
    tpu.vector_store %arg6[%c0_27, %c0_28, %c0_29], %65 {strides = array<i32>} : memref<1x8x128xf32, #tpu.memory_space<vmem>>, vector<1x8x128xf32>,
    return
  }
  func.func @transform_0(%arg0: i32, %arg1: i32) -> (i32, i32, i32) {
    %c0_i32 = arith.constant 0 : i32
    %c0_i32_0 = arith.constant 0 : i32
    return %arg0, %c0_i32, %arg1 : i32, i32, i32
  }
  func.func @transform_1(%arg0: i32, %arg1: i32) -> (i32, i32, i32) {
    %c0_i32 = arith.constant 0 : i32
    %c0_i32_0 = arith.constant 0 : i32
    %c0_i32_1 = arith.constant 0 : i32
    return %arg0, %c0_i32, %c0_i32_0 : i32, i32, i32
  }
  func.func @transform_2(%arg0: i32, %arg1: i32) -> (i32, i32, i32) {
    %c0_i32 = arith.constant 0 : i32
    %c0_i32_0 = arith.constant 0 : i32
    %c0_i32_1 = arith.constant 0 : i32
    %c0_i32_2 = arith.constant 0 : i32
    return %c0_i32, %c0_i32_0, %c0_i32_1 : i32, i32, i32
  }
  func.func @transform_3(%arg0: i32, %arg1: i32) -> (i32, i32) {
    %c0_i32 = arith.constant 0 : i32
    %c0_i32_0 = arith.constant 0 : i32
    %c0_i32_1 = arith.constant 0 : i32
    return %c0_i32, %c0_i32_0 : i32, i32
  }
  func.func @transform_4(%arg0: i32, %arg1: i32) -> (i32, i32, i32) {
    %c0_i32 = arith.constant 0 : i32
    %c0_i32_0 = arith.constant 0 : i32
    return %arg0, %c0_i32, %arg1 : i32, i32, i32
  }
}

</mosaic_0001>

<llo_original>
// kernel: tpu_custom_call.1
$region0: #{tpu_custom_call.1}
  #allocation0 [shape = 'u32[]', space=smem, size = 0x4, offset = 0x4, fixed_abs, tag = 'smem constant byte address 0x4 - core index']
  #allocation1 [shape = 'u32[144,128]{1,0:T(1,128)}', space=vmem, size = 0x12000, scoped, tag = 'internal scratch']
  %s0 = inlined_call_operand.vmem [shape: s32[2,5,256], index: 0, kind: input, shape index: {}]
  %s1 = inlined_call_operand.vmem [shape: f32[2,4,201], index: 1, kind: input, shape index: {}]
  %s2 = inlined_call_operand.vmem [shape: f32[5,8,4], index: 2, kind: input, shape index: {}]
  %s3 = inlined_call_operand.vmem [shape: f32[8,1], index: 3, kind: input, shape index: {}]
  %s4 = inlined_call_operand.hbm [shape: f32[2,8,256], index: 4, kind: output, shape index: {}]
  %s5 = sld [smem:[#allocation0]]
  $region49: #{tpu_custom_call.1} parent=0
    _
  %s7 = ssub.s32 1, %s5
  %s8 = scalar_select 0, %s7, %s5
  $region1: #{tpu_custom_call.1} parent=0
    #allocation2 [shape = 'u8[8192]{0}', space=vmem, size = 0x2000, scoped, tag = 'output window, operand 0']
    #allocation3 [shape = 's32[2]{0}', space=sflag, size = 0x8, scoped, tag = 'scoped memory for tpu_custom_call.1']
    %9 = vsyncpa [#allocation3], 0
    %s10 = scalar_lea.sflag [#allocation3], 1
    %11 = vsyncpa %s10, 0
    loop: start=0, step=1, limit=6
    $region2: #{tpu_custom_call.1} parent=1 // loop_pre_header
      _
    $region3: #{tpu_custom_call.1} parent=1 // loop_header
      %s13 = sphi 0, %s17
      %p14 = scmp.ge.s32.totalorder %s13, 6
      %s20 = sphi 0, %s32
      %s21 = sphi 0, %s28
      %s22 = sphi 0, %s20
      %s23 = sphi 0, %s21
      %s24 = sphi 0, %s22
      %s25 = sphi 0, %s23
      %s37 = sphi 0, %s39
      %s40 = sphi 0, %s37
      %s41 = sphi 0, %s40
      %s57 = sphi 0, %s41
      %s63 = sphi 0, %s65
      %s66 = sphi 0, %s63
      %s67 = sphi 0, %s66
      %s83 = sphi 0, %s67
      %s87 = sphi 0, %s87
      %s89 = sphi 0, %s87
      %s90 = sphi 0, %s89
      %s104 = sphi 0, %s90
      %s108 = sphi 0, %s108
      %s110 = sphi 0, %s108
      %s111 = sphi 0, %s110
      %s125 = sphi 0, %s111
      %s133 = sphi 0, %s135
      %s136 = sphi 0, %s133
      %s137 = sphi 0, %s136
      %s153 = sphi 0, %s137
    $region4: #{tpu_custom_call.1} parent=1 // loop_header_branch
      %16 = sbr.rel (%p14) target = $region8
    $region5: #{tpu_custom_call.1} parent=1 // loop_body
      %s18 = ssub.s32 %s13, 1
      %s19 = ssub.s32 %s13, 2
      %s26 = sadd.s32 1, %s21
      %p27 = scmp.ge.s32.totalorder %s26, 2
      %s28 = scalar_select %p27, 0, %s26
      %s29 = sadd.s32 1, %s20
      %s30 = scalar_select %p27, %s29, %s20
      %p31 = scmp.ge.s32.totalorder %s30, 2
      %s32 = scalar_select %p31, 0, %s30
      %s33 = ssub.s32 %s20, %s32
      %s34 = ssub.s32 %s21, %s28
      %s35 = sor.u32 %s33, %s34
      %p36 = scmp.eq.s32.totalorder %s35, 0
      %s38 = sadd.s32 %s37, 1
      %s39 = scalar_select %p36, %s37, %s38
      %p42 = pneg %p36
      %p43 = scmp.eq.s32.totalorder %s13, 3
      %p44 = por %p42, %p43
      %p45 = scmp.ne.s32.totalorder %s37, %s40
      %p46 = scmp.eq.s32.totalorder %s13, 0
      %p47 = por %p45, %p46
      %p48 = scmp.ne.s32.totalorder %s37, %s40
      %p49 = scmp.eq.s32.totalorder %s18, 3
      %p50 = por %p48, %p49
      %p51 = scmp.ne.s32.totalorder %s40, %s41
      %p52 = scmp.eq.s32.totalorder %s18, 0
      %p53 = por %p51, %p52
      %p54 = scmp.ne.s32.totalorder %s40, %s41
      %p55 = scmp.eq.s32.totalorder %s19, 3
      %p56 = por %p54, %p55
      %p58 = scmp.ne.s32.totalorder %s41, %s57
      %p59 = scmp.eq.s32.totalorder %s19, 0
      %p60 = por %p58, %p59
      %s61 = ssub.s32 %s20, %s32
      %p62 = scmp.eq.s32.totalorder %s61, 0
      %s64 = sadd.s32 %s63, 1
      %s65 = scalar_select %p62, %s63, %s64
      %p68 = pneg %p62
      %p69 = scmp.eq.s32.totalorder %s13, 3
      %p70 = por %p68, %p69
      %p71 = scmp.ne.s32.totalorder %s63, %s66
      %p72 = scmp.eq.s32.totalorder %s13, 0
      %p73 = por %p71, %p72
      %p74 = scmp.ne.s32.totalorder %s63, %s66
      %p75 = scmp.eq.s32.totalorder %s18, 3
      %p76 = por %p74, %p75
      %p77 = scmp.ne.s32.totalorder %s66, %s67
      %p78 = scmp.eq.s32.totalorder %s18, 0
      %p79 = por %p77, %p78
      %p80 = scmp.ne.s32.totalorder %s66, %s67
      %p81 = scmp.eq.s32.totalorder %s19, 3
      %p82 = por %p80, %p81
      %p84 = scmp.ne.s32.totalorder %s67, %s83
      %p85 = scmp.eq.s32.totalorder %s19, 0
      %p86 = por %p84, %p85
      %s88 = sadd.s32 %s87, 1
      %p91 = scmp.eq.s32.totalorder %s13, 3
      %p92 = scmp.ne.s32.totalorder %s87, %s89
      %p93 = scmp.eq.s32.totalorder %s13, 0
      %p94 = por %p92, %p93
      %p95 = scmp.ne.s32.totalorder %s87, %s89
      %p96 = scmp.eq.s32.totalorder %s18, 3
      %p97 = por %p95, %p96
      %p98 = scmp.ne.s32.totalorder %s89, %s90
      %p99 = scmp.eq.s32.totalorder %s18, 0
      %p100 = por %p98, %p99
      %p101 = scmp.ne.s32.totalorder %s89, %s90
      %p102 = scmp.eq.s32.totalorder %s19, 3
      %p103 = por %p101, %p102
      %p105 = scmp.ne.s32.totalorder %s90, %s104
      %p106 = scmp.eq.s32.totalorder %s19, 0
      %p107 = por %p105, %p106
      %s109 = sadd.s32 %s108, 1
      %p112 = scmp.eq.s32.totalorder %s13, 3
      %p113 = scmp.ne.s32.totalorder %s108, %s110
      %p114 = scmp.eq.s32.totalorder %s13, 0
      %p115 = por %p113, %p114
      %p116 = scmp.ne.s32.totalorder %s108, %s110
      %p117 = scmp.eq.s32.totalorder %s18, 3
      %p118 = por %p116, %p117
      %p119 = scmp.ne.s32.totalorder %s110, %s111
      %p120 = scmp.eq.s32.totalorder %s18, 0
      %p121 = por %p119, %p120
      %p122 = scmp.ne.s32.totalorder %s110, %s111
      %p123 = scmp.eq.s32.totalorder %s19, 3
      %p124 = por %p122, %p123
      %p126 = scmp.ne.s32.totalorder %s111, %s125
      %p127 = scmp.eq.s32.totalorder %s19, 0
      %p128 = por %p126, %p127
      %s129 = ssub.s32 %s20, %s32
      %s130 = ssub.s32 %s21, %s28
      %s131 = sor.u32 %s129, %s130
      %p132 = scmp.eq.s32.totalorder %s131, 0
      %s134 = sadd.s32 %s133, 1
      %s135 = scalar_select %p132, %s133, %s134
      %p138 = pneg %p132
      %p139 = scmp.eq.s32.totalorder %s13, 3
      %p140 = por %p138, %p139
      %p141 = scmp.ne.s32.totalorder %s133, %s136
      %p142 = scmp.eq.s32.totalorder %s13, 0
      %p143 = por %p141, %p142
      %p144 = scmp.ne.s32.totalorder %s133, %s136
      %p145 = scmp.eq.s32.totalorder %s18, 3
      %p146 = por %p144, %p145
      %p147 = scmp.ne.s32.totalorder %s136, %s137
      %p148 = scmp.eq.s32.totalorder %s18, 0
      %p149 = por %p147, %p148
      %p150 = scmp.ne.s32.totalorder %s136, %s137
      %p151 = scmp.eq.s32.totalorder %s19, 3
      %p152 = por %p150, %p151
      %p154 = scmp.ne.s32.totalorder %s137, %s153
      %p155 = scmp.eq.s32.totalorder %s19, 0
      %p156 = por %p154, %p155
      %p157 = scmp.le.s32.totalorder 1, %s13
      %p158 = scmp.lt.s32.totalorder %s13, 5
      %p159 = pnand %p157, %p158
      %p160 = pneg %p159
      // Predicated region
      $region9: #{tpu_custom_call.1} parent=5 // pred_check
        _
      $region10: #{tpu_custom_call.1} parent=5 // pred_check_branch
        %162 = sbr.rel (%p159) target = $region12
      $region11: #{tpu_custom_call.1} parent=5 // pred_region
        %s163 = ssub.s32 %s13, 1
        // Predicated region
        $region13: #{tpu_custom_call.1} parent=11 // pred_check
          %p164 = pneg %p100
        $region14: #{tpu_custom_call.1} parent=11 // pred_check_branch
          %166 = sbr.rel (%p164) target = $region16
        $region15: #{tpu_custom_call.1} parent=11 // pred_region
          _
        $region16: #{tpu_custom_call.1} parent=11 // pred_fallthru
          _
        // Predicated region
        $region17: #{tpu_custom_call.1} parent=11 // pred_check
          %p167 = pneg %p121
        $region18: #{tpu_custom_call.1} parent=11 // pred_check_branch
          %169 = sbr.rel (%p167) target = $region20
        $region19: #{tpu_custom_call.1} parent=11 // pred_region
          _
        $region20: #{tpu_custom_call.1} parent=11 // pred_fallthru
          _
      $region12: #{tpu_custom_call.1} parent=5 // pred_fallthru
        _
      %p170 = scmp.lt.s32.totalorder %s13, 4
      // Predicated region
      $region21: #{tpu_custom_call.1} parent=5 // pred_check
        %p171 = pneg %p170
      $region22: #{tpu_custom_call.1} parent=5 // pred_check_branch
        %173 = sbr.rel (%p171) target = $region24
      $region23: #{tpu_custom_call.1} parent=5 // pred_region
        // Predicated region
        $region25: #{tpu_custom_call.1} parent=23 // pred_check
          %p174 = pneg %p47
        $region26: #{tpu_custom_call.1} parent=23 // pred_check_branch
          %176 = sbr.rel (%p174) target = $region28
        $region27: #{tpu_custom_call.1} parent=23 // pred_region
          %p177 = scmp.lt.s32.totalorder %s20, 1
          %s178 = scalar_select %p177, %s20, 1
          %p179 = scmp.lt.s32.totalorder %s21, 1
          %s180 = scalar_select %p179, %s21, 1
          %s181 = smul.addr %s178, 2
          %s182 = sadd.s32 %s180, %s181
          %s183 = smul.addr %s182, 8
          %s184 = scalar_lea.vmem %s0, %s183
        $region28: #{tpu_custom_call.1} parent=23 // pred_fallthru
          _
        // Predicated region
        $region29: #{tpu_custom_call.1} parent=23 // pred_check
          %p185 = pneg %p73
        $region30: #{tpu_custom_call.1} parent=23 // pred_check_branch
          %187 = sbr.rel (%p185) target = $region32
        $region31: #{tpu_custom_call.1} parent=23 // pred_region
          %p188 = scmp.lt.s32.totalorder %s20, 1
          %s189 = scalar_select %p188, %s20, 1
          %s190 = smul.addr %s189, 2
          %s191 = smul.addr %s190, 4
          %s192 = scalar_lea.vmem %s1, %s191
        $region32: #{tpu_custom_call.1} parent=23 // pred_fallthru
          _
      $region24: #{tpu_custom_call.1} parent=5 // pred_fallthru
        _
      %p193 = scmp.le.s32.totalorder 1, %s13
      %p194 = scmp.lt.s32.totalorder %s13, 5
      %p195 = pnand %p193, %p194
      %p196 = pneg %p195
      // Predicated region
      $region33: #{tpu_custom_call.1} parent=5 // pred_check
        _
      $region34: #{tpu_custom_call.1} parent=5 // pred_check_branch
        %198 = sbr.rel (%p195) target = $region36
      $region35: #{tpu_custom_call.1} parent=5 // pred_region
        %s199 = ssub.s32 %s13, 1
        %p200 = scmp.lt.s32.totalorder %s22, 1
        %s201 = scalar_select %p200, %s22, 1
        %p202 = scmp.lt.s32.totalorder %s23, 1
        %s203 = scalar_select %p202, %s23, 1
        %s204 = smul.addr %s201, 2
        %s205 = sadd.s32 %s203, %s204
        %s206 = smul.addr %s205, 8
        %s207 = scalar_lea.vmem %s0, %s206
        %p208 = pneg %p53
        %p209 = pneg %p50
        %p210 = scmp.lt.s32.totalorder %s22, 1
        %s211 = scalar_select %p210, %s22, 1
        %s212 = smul.addr %s211, 2
        %s213 = smul.addr %s212, 4
        %s214 = scalar_lea.vmem %s1, %s213
        %p215 = pneg %p79
        %p216 = pneg %p76
        %p217 = pneg %p100
        %p218 = pneg %p97
        %p219 = pneg %p121
        %p220 = pneg %p118
        %p221 = pneg %p149
        %p222 = pneg %p146
        %s223 = sand.u32 %s136, 1
        %s224 = scalar_lea.sflag [#allocation3], %s223
        %s225 = sand.u32 %s136, 1
        %s226 = smul.addr %s225, 8
        %s227 = scalar_lea.vmem [#allocation2], %s226
        %p228 = scmp.lt.s32.totalorder %s22, 1
        %s229 = scalar_select %p228, %s22, 1
        %p230 = scmp.lt.s32.totalorder %s23, 1
        %s231 = scalar_select %p230, %s23, 1
        %s232 = smul.addr %s229, 2
        %s233 = sadd.s32 %s231, %s232
        %s234 = smul.addr %s233, 8
        %s235 = scalar_lea.vmem %s0, %s234
        %p236 = scmp.lt.s32.totalorder %s22, 1
        %s237 = scalar_select %p236, %s22, 1
        %s238 = smul.addr %s237, 2
        %s239 = smul.addr %s238, 4
        %s240 = scalar_lea.vmem %s1, %s239
        %v241 = vld [vmem:[%s240] sm:$0xff]
        %v242 = vld [vmem:[%s235] sm:$0x1f]
        %v243 = vlaneseq
        %v244 = vshrl.u32 %v243, 7
        %v245 = vadd.s32 %v244, 8
        %v246 = vadd.s32 %v244, 16
        %v247 = vadd.s32 %v244, 24
        %v248 = vadd.s32 %v244, 32
        %v249 = vadd.s32 %v244, 40
        %v250 = vadd.s32 %v244, 48
        %v251 = vadd.s32 %v244, 56
        %v252 = vadd.s32 %v244, 64
        %v253 = vadd.s32 %v244, 72
        %v254 = vadd.s32 %v244, 80
        %v255 = vadd.s32 %v244, 88
        %v256 = vadd.s32 %v244, 96
        %v257 = vadd.s32 %v244, 104
        %v258 = vadd.s32 %v244, 112
        %v259 = vadd.s32 %v244, 120
        %v260 = vadd.s32 %v244, 128
        %v261 = vadd.s32 %v244, 136
        %v262 = vadd.s32 %v244, 144
        %v263 = vadd.s32 %v244, 152
        %v264 = vadd.s32 %v244, 160
        %v265 = vadd.s32 %v244, 168
        %v266 = vadd.s32 %v244, 176
        %v267 = vadd.s32 %v244, 184
        %v268 = vadd.s32 %v244, 192
        %v269 = vadd.s32 %v244, 200
        %v270 = vlaneseq
        %v271 = vshrl.u32 %v270, 7
        %v272 = vsub.s32 0, %v271
        %v273 = vrot.slane %v242, %v272
        %vm274 = vcmp.eq.s32.totalorder %v273, %v244
        %vm275 = vcmp.eq.s32.totalorder %v273, %v245
        %vm276 = vcmp.eq.s32.totalorder %v273, %v246
        %vm277 = vcmp.eq.s32.totalorder %v273, %v247
        %vm278 = vcmp.eq.s32.totalorder %v273, %v248
        %vm279 = vcmp.eq.s32.totalorder %v273, %v249
        %vm280 = vcmp.eq.s32.totalorder %v273, %v250
        %vm281 = vcmp.eq.s32.totalorder %v273, %v251
        %vm282 = vcmp.eq.s32.totalorder %v273, %v252
        %vm283 = vcmp.eq.s32.totalorder %v273, %v253
        %vm284 = vcmp.eq.s32.totalorder %v273, %v254
        %vm285 = vcmp.eq.s32.totalorder %v273, %v255
        %vm286 = vcmp.eq.s32.totalorder %v273, %v256
        %vm287 = vcmp.eq.s32.totalorder %v273, %v257
        %vm288 = vcmp.eq.s32.totalorder %v273, %v258
        %vm289 = vcmp.eq.s32.totalorder %v273, %v259
        %vm290 = vcmp.eq.s32.totalorder %v273, %v260
        %vm291 = vcmp.eq.s32.totalorder %v273, %v261
        %vm292 = vcmp.eq.s32.totalorder %v273, %v262
        %vm293 = vcmp.eq.s32.totalorder %v273, %v263
        %vm294 = vcmp.eq.s32.totalorder %v273, %v264
        %vm295 = vcmp.eq.s32.totalorder %v273, %v265
        %vm296 = vcmp.eq.s32.totalorder %v273, %v266
        %vm297 = vcmp.eq.s32.totalorder %v273, %v267
        %vm298 = vcmp.eq.s32.totalorder %v273, %v268
        %vm299 = vcmp.eq.s32.totalorder %v273, %v269
        %v300 = vsel %vm274, 1, 0
        %v301 = vsel %vm275, 1, 0
        %v302 = vsel %vm276, 1, 0
        %v303 = vsel %vm277, 1, 0
        %v304 = vsel %vm278, 1, 0
        %v305 = vsel %vm279, 1, 0
        %v306 = vsel %vm280, 1, 0
        %v307 = vsel %vm281, 1, 0
        %v308 = vsel %vm282, 1, 0
        %v309 = vsel %vm283, 1, 0
        %v310 = vsel %vm284, 1, 0
        %v311 = vsel %vm285, 1, 0
        %v312 = vsel %vm286, 1, 0
        %v313 = vsel %vm287, 1, 0
        %v314 = vsel %vm288, 1, 0
        %v315 = vsel %vm289, 1, 0
        %v316 = vsel %vm290, 1, 0
        %v317 = vsel %vm291, 1, 0
        %v318 = vsel %vm292, 1, 0
        %v319 = vsel %vm293, 1, 0
        %v320 = vsel %vm294, 1, 0
        %v321 = vsel %vm295, 1, 0
        %v322 = vsel %vm296, 1, 0
        %v323 = vsel %vm297, 1, 0
        %v324 = vsel %vm298, 1, 0
        %v325 = vsel %vm299, 1, 0
        %v326 = vcvt.s32.f32 %v300
        %v327 = vcvt.s32.f32 %v301
        %v328 = vcvt.s32.f32 %v302
        %v329 = vcvt.s32.f32 %v303
        %v330 = vcvt.s32.f32 %v304
        %v331 = vcvt.s32.f32 %v305
        %v332 = vcvt.s32.f32 %v306
        %v333 = vcvt.s32.f32 %v307
        %v334 = vcvt.s32.f32 %v308
        %v335 = vcvt.s32.f32 %v309
        %v336 = vcvt.s32.f32 %v310
        %v337 = vcvt.s32.f32 %v311
        %v338 = vcvt.s32.f32 %v312
        %v339 = vcvt.s32.f32 %v313
        %v340 = vcvt.s32.f32 %v314
        %v341 = vcvt.s32.f32 %v315
        %v342 = vcvt.s32.f32 %v316
        %v343 = vcvt.s32.f32 %v317
        %v344 = vcvt.s32.f32 %v318
        %v345 = vcvt.s32.f32 %v319
        %v346 = vcvt.s32.f32 %v320
        %v347 = vcvt.s32.f32 %v321
        %v348 = vcvt.s32.f32 %v322
        %v349 = vcvt.s32.f32 %v323
        %v350 = vcvt.s32.f32 %v324
        %v351 = vcvt.s32.f32 %v325
        %v353 = vcombine.high %v241, %v241
        %vm354 = vcmask 596992
        %v355 = vsel %vm354, %v353, 0
        %vm357 = vcmask 1040384
        %v359 = vsel %vm357, %v351, 0
        %361 = vmatprep.subr.mxu0 0.0
        %362 = vmatpush1.msra.mxu0 %v326
        %363 = vmatprep.subr.mxu0 0.0
        %364 = vmatpush1.msra.mxu0 %v327
        %365 = vmatprep.subr.mxu0 0.0
        %366 = vmatpush1.msra.mxu0 %v328
        %367 = vmatprep.subr.mxu0 0.0
        %368 = vmatpush1.msra.mxu0 %v329
        %369 = vmatprep.subr.mxu0 0.0
        %370 = vmatpush1.msra.mxu0 %v330
        %371 = vmatprep.subr.mxu0 0.0
        %372 = vmatpush1.msra.mxu0 %v331
        %373 = vmatprep.subr.mxu0 0.0
        %374 = vmatpush1.msra.mxu0 %v332
        %375 = vmatprep.subr.mxu0 0.0
        %376 = vmatpush1.msra.mxu0 %v333
        %377 = vmatprep.subr.mxu0 0.0
        %378 = vmatpush1.msra.mxu0 %v334
        %379 = vmatprep.subr.mxu0 0.0
        %380 = vmatpush1.msra.mxu0 %v335
        %381 = vmatprep.subr.mxu0 0.0
        %382 = vmatpush1.msra.mxu0 %v336
        %383 = vmatprep.subr.mxu0 0.0
        %384 = vmatpush1.msra.mxu0 %v337
        %385 = vmatprep.subr.mxu0 0.0
        %386 = vmatpush1.msra.mxu0 %v338
        %387 = vmatprep.subr.mxu0 0.0
        %388 = vmatpush1.msra.mxu0 %v339
        %389 = vmatprep.subr.mxu0 0.0
        %390 = vmatpush1.msra.mxu0 %v340
        %391 = vmatprep.subr.mxu0 0.0
        %392 = vmatpush1.msra.mxu0 %v341
        %393 = vmatprep.subr.mxu0 0.0
        %394 = vmatpush1.msra.mxu0 %v342
        %395 = vmatprep.subr.mxu0 0.0
        %396 = vmatpush1.msra.mxu0 %v343
        %397 = vmatprep.subr.mxu0 0.0
        %398 = vmatpush1.msra.mxu0 %v344
        %399 = vmatprep.subr.mxu0 0.0
        %400 = vmatpush1.msra.mxu0 %v345
        %401 = vmatprep.subr.mxu0 0.0
        %402 = vmatpush1.msra.mxu0 %v346
        %403 = vmatprep.subr.mxu0 0.0
        %404 = vmatpush1.msra.mxu0 %v347
        %405 = vmatprep.subr.mxu0 0.0
        %406 = vmatpush1.msra.mxu0 %v348
        %407 = vmatprep.subr.mxu0 0.0
        %408 = vmatpush1.msra.mxu0 %v349
        %409 = vmatprep.subr.mxu0 0.0
        %410 = vmatpush1.msra.mxu0 %v350
        %411 = vmatprep.subr.mxu0 0.0
        %412 = vmatpush1.msra.mxu0 %v359
        %413 = vmatprep.subr.mxu0 0.0
        %414 = vmatpush1.msra.mxu0 0.0
        %415 = vmatprep.subr.mxu0 0.0
        %416 = vmatpush1.msra.mxu0 0.0
        %417 = vmatprep.subr.mxu0 0.0
        %418 = vmatpush1.msra.mxu0 0.0
        %419 = vmatprep.subr.mxu0 0.0
        %420 = vmatpush1.msra.mxu0 0.0
        %421 = vmatprep.subr.mxu0 0.0
        %422 = vmatpush1.msra.mxu0 0.0
        %423 = vmatprep.subr.mxu0 0.0
        %424 = vmatpush1.msra.mxu0 0.0
        %425 = vmatprep.mubr.f32.mxu0 %v355
        %426 = vmatmul.mubr.f32.gmra.mrb[0].mxu0 %v241
        %v427 = vpop.f32.mrb[0].mxu0
        %v428 = vadd.f32 0.0, %v427
        %v429 = vpop.f32.mrb[0].mxu0
        %430 = vdwg.mxu0
        %v431 = vlaneseq
        %v432 = vshrl.u32 %v431, 7
        %v433 = vsub.s32 1, %v432
        %v434 = vrot.slane %v242, %v433
        %vm435 = vcmp.eq.s32.totalorder %v434, %v244
        %vm436 = vcmp.eq.s32.totalorder %v434, %v245
        %vm437 = vcmp.eq.s32.totalorder %v434, %v246
        %vm438 = vcmp.eq.s32.totalorder %v434, %v247
        %vm439 = vcmp.eq.s32.totalorder %v434, %v248
        %vm440 = vcmp.eq.s32.totalorder %v434, %v249
        %vm441 = vcmp.eq.s32.totalorder %v434, %v250
        %vm442 = vcmp.eq.s32.totalorder %v434, %v251
        %vm443 = vcmp.eq.s32.totalorder %v434, %v252
        %vm444 = vcmp.eq.s32.totalorder %v434, %v253
        %vm445 = vcmp.eq.s32.totalorder %v434, %v254
        %vm446 = vcmp.eq.s32.totalorder %v434, %v255
        %vm447 = vcmp.eq.s32.totalorder %v434, %v256
        %vm448 = vcmp.eq.s32.totalorder %v434, %v257
        %vm449 = vcmp.eq.s32.totalorder %v434, %v258
        %vm450 = vcmp.eq.s32.totalorder %v434, %v259
        %vm451 = vcmp.eq.s32.totalorder %v434, %v260
        %vm452 = vcmp.eq.s32.totalorder %v434, %v261
        %vm453 = vcmp.eq.s32.totalorder %v434, %v262
        %vm454 = vcmp.eq.s32.totalorder %v434, %v263
        %vm455 = vcmp.eq.s32.totalorder %v434, %v264
        %vm456 = vcmp.eq.s32.totalorder %v434, %v265
        %vm457 = vcmp.eq.s32.totalorder %v434, %v266
        %vm458 = vcmp.eq.s32.totalorder %v434, %v267
        %vm459 = vcmp.eq.s32.totalorder %v434, %v268
        %vm460 = vcmp.eq.s32.totalorder %v434, %v269
        %v461 = vsel %vm435, 1, 0
        %v462 = vsel %vm436, 1, 0
        %v463 = vsel %vm437, 1, 0
        %v464 = vsel %vm438, 1, 0
        %v465 = vsel %vm439, 1, 0
        %v466 = vsel %vm440, 1, 0
        %v467 = vsel %vm441, 1, 0
        %v468 = vsel %vm442, 1, 0
        %v469 = vsel %vm443, 1, 0
        %v470 = vsel %vm444, 1, 0
        %v471 = vsel %vm445, 1, 0
        %v472 = vsel %vm446, 1, 0
        %v473 = vsel %vm447, 1, 0
        %v474 = vsel %vm448, 1, 0
        %v475 = vsel %vm449, 1, 0
        %v476 = vsel %vm450, 1, 0
        %v477 = vsel %vm451, 1, 0
        %v478 = vsel %vm452, 1, 0
        %v479 = vsel %vm453, 1, 0
        %v480 = vsel %vm454, 1, 0
        %v481 = vsel %vm455, 1, 0
        %v482 = vsel %vm456, 1, 0
        %v483 = vsel %vm457, 1, 0
        %v484 = vsel %vm458, 1, 0
        %v485 = vsel %vm459, 1, 0
        %v486 = vsel %vm460, 1, 0
        %v487 = vcvt.s32.f32 %v461
        %v488 = vcvt.s32.f32 %v462
        %v489 = vcvt.s32.f32 %v463
        %v490 = vcvt.s32.f32 %v464
        %v491 = vcvt.s32.f32 %v465
        %v492 = vcvt.s32.f32 %v466
        %v493 = vcvt.s32.f32 %v467
        %v494 = vcvt.s32.f32 %v468
        %v495 = vcvt.s32.f32 %v469
        %v496 = vcvt.s32.f32 %v470
        %v497 = vcvt.s32.f32 %v471
        %v498 = vcvt.s32.f32 %v472
        %v499 = vcvt.s32.f32 %v473
        %v500 = vcvt.s32.f32 %v474
        %v501 = vcvt.s32.f32 %v475
        %v502 = vcvt.s32.f32 %v476
        %v503 = vcvt.s32.f32 %v477
        %v504 = vcvt.s32.f32 %v478
        %v505 = vcvt.s32.f32 %v479
        %v506 = vcvt.s32.f32 %v480
        %v507 = vcvt.s32.f32 %v481
        %v508 = vcvt.s32.f32 %v482
        %v509 = vcvt.s32.f32 %v483
        %v510 = vcvt.s32.f32 %v484
        %v511 = vcvt.s32.f32 %v485
        %v512 = vcvt.s32.f32 %v486
        %v514 = vsel %vm357, %v512, 0
        %516 = vmatprep.subr.mxu0 0.0
        %517 = vmatpush1.msra.mxu0 %v487
        %518 = vmatprep.subr.mxu0 0.0
        %519 = vmatpush1.msra.mxu0 %v488
        %520 = vmatprep.subr.mxu0 0.0
        %521 = vmatpush1.msra.mxu0 %v489
        %522 = vmatprep.subr.mxu0 0.0
        %523 = vmatpush1.msra.mxu0 %v490
        %524 = vmatprep.subr.mxu0 0.0
        %525 = vmatpush1.msra.mxu0 %v491
        %526 = vmatprep.subr.mxu0 0.0
        %527 = vmatpush1.msra.mxu0 %v492
        %528 = vmatprep.subr.mxu0 0.0
        %529 = vmatpush1.msra.mxu0 %v493
        %530 = vmatprep.subr.mxu0 0.0
        %531 = vmatpush1.msra.mxu0 %v494
        %532 = vmatprep.subr.mxu0 0.0
        %533 = vmatpush1.msra.mxu0 %v495
        %534 = vmatprep.subr.mxu0 0.0
        %535 = vmatpush1.msra.mxu0 %v496
        %536 = vmatprep.subr.mxu0 0.0
        %537 = vmatpush1.msra.mxu0 %v497
        %538 = vmatprep.subr.mxu0 0.0
        %539 = vmatpush1.msra.mxu0 %v498
        %540 = vmatprep.subr.mxu0 0.0
        %541 = vmatpush1.msra.mxu0 %v499
        %542 = vmatprep.subr.mxu0 0.0
        %543 = vmatpush1.msra.mxu0 %v500
        %544 = vmatprep.subr.mxu0 0.0
        %545 = vmatpush1.msra.mxu0 %v501
        %546 = vmatprep.subr.mxu0 0.0
        %547 = vmatpush1.msra.mxu0 %v502
        %548 = vmatprep.subr.mxu0 0.0
        %549 = vmatpush1.msra.mxu0 %v503
        %550 = vmatprep.subr.mxu0 0.0
        %551 = vmatpush1.msra.mxu0 %v504
        %552 = vmatprep.subr.mxu0 0.0
        %553 = vmatpush1.msra.mxu0 %v505
        %554 = vmatprep.subr.mxu0 0.0
        %555 = vmatpush1.msra.mxu0 %v506
        %556 = vmatprep.subr.mxu0 0.0
        %557 = vmatpush1.msra.mxu0 %v507
        %558 = vmatprep.subr.mxu0 0.0
        %559 = vmatpush1.msra.mxu0 %v508
        %560 = vmatprep.subr.mxu0 0.0
        %561 = vmatpush1.msra.mxu0 %v509
        %562 = vmatprep.subr.mxu0 0.0
        %563 = vmatpush1.msra.mxu0 %v510
        %564 = vmatprep.subr.mxu0 0.0
        %565 = vmatpush1.msra.mxu0 %v511
        %566 = vmatprep.subr.mxu0 0.0
        %567 = vmatpush1.msra.mxu0 %v514
        %568 = vmatprep.subr.mxu0 0.0
        %569 = vmatpush1.msra.mxu0 0.0
        %570 = vmatprep.subr.mxu0 0.0
        %571 = vmatpush1.msra.mxu0 0.0
        %572 = vmatprep.subr.mxu0 0.0
        %573 = vmatpush1.msra.mxu0 0.0
        %574 = vmatprep.subr.mxu0 0.0
        %575 = vmatpush1.msra.mxu0 0.0
        %576 = vmatprep.subr.mxu0 0.0
        %577 = vmatpush1.msra.mxu0 0.0
        %578 = vmatprep.subr.mxu0 0.0
        %579 = vmatpush1.msra.mxu0 0.0
        %580 = vmatprep.mubr.f32.mxu0 %v355
        %581 = vmatmul.mubr.f32.gmra.mrb[0].mxu0 %v241
        %v582 = vpop.f32.mrb[0].mxu0
        %v583 = vadd.f32 0.0, %v582
        %v584 = vpop.f32.mrb[0].mxu0
        %585 = vdwg.mxu0
        %v586 = vlaneseq
        %v587 = vshrl.u32 %v586, 7
        %v588 = vsub.s32 2, %v587
        %v589 = vrot.slane %v242, %v588
        %vm590 = vcmp.eq.s32.totalorder %v589, %v244
        %vm591 = vcmp.eq.s32.totalorder %v589, %v245
        %vm592 = vcmp.eq.s32.totalorder %v589, %v246
        %vm593 = vcmp.eq.s32.totalorder %v589, %v247
        %vm594 = vcmp.eq.s32.totalorder %v589, %v248
        %vm595 = vcmp.eq.s32.totalorder %v589, %v249
        %vm596 = vcmp.eq.s32.totalorder %v589, %v250
        %vm597 = vcmp.eq.s32.totalorder %v589, %v251
        %vm598 = vcmp.eq.s32.totalorder %v589, %v252
        %vm599 = vcmp.eq.s32.totalorder %v589, %v253
        %vm600 = vcmp.eq.s32.totalorder %v589, %v254
        %vm601 = vcmp.eq.s32.totalorder %v589, %v255
        %vm602 = vcmp.eq.s32.totalorder %v589, %v256
        %vm603 = vcmp.eq.s32.totalorder %v589, %v257
        %vm604 = vcmp.eq.s32.totalorder %v589, %v258
        %vm605 = vcmp.eq.s32.totalorder %v589, %v259
        %vm606 = vcmp.eq.s32.totalorder %v589, %v260
        %vm607 = vcmp.eq.s32.totalorder %v589, %v261
        %vm608 = vcmp.eq.s32.totalorder %v589, %v262
        %vm609 = vcmp.eq.s32.totalorder %v589, %v263
        %vm610 = vcmp.eq.s32.totalorder %v589, %v264
        %vm611 = vcmp.eq.s32.totalorder %v589, %v265
        %vm612 = vcmp.eq.s32.totalorder %v589, %v266
        %vm613 = vcmp.eq.s32.totalorder %v589, %v267
        %vm614 = vcmp.eq.s32.totalorder %v589, %v268
        %vm615 = vcmp.eq.s32.totalorder %v589, %v269
        %v616 = vsel %vm590, 1, 0
        %v617 = vsel %vm591, 1, 0
        %v618 = vsel %vm592, 1, 0
        %v619 = vsel %vm593, 1, 0
        %v620 = vsel %vm594, 1, 0
        %v621 = vsel %vm595, 1, 0
        %v622 = vsel %vm596, 1, 0
        %v623 = vsel %vm597, 1, 0
        %v624 = vsel %vm598, 1, 0
        %v625 = vsel %vm599, 1, 0
        %v626 = vsel %vm600, 1, 0
        %v627 = vsel %vm601, 1, 0
        %v628 = vsel %vm602, 1, 0
        %v629 = vsel %vm603, 1, 0
        %v630 = vsel %vm604, 1, 0
        %v631 = vsel %vm605, 1, 0
        %v632 = vsel %vm606, 1, 0
        %v633 = vsel %vm607, 1, 0
        %v634 = vsel %vm608, 1, 0
        %v635 = vsel %vm609, 1, 0
        %v636 = vsel %vm610, 1, 0
        %v637 = vsel %vm611, 1, 0
        %v638 = vsel %vm612, 1, 0
        %v639 = vsel %vm613, 1, 0
        %v640 = vsel %vm614, 1, 0
        %v641 = vsel %vm615, 1, 0
        %v642 = vcvt.s32.f32 %v616
        %v643 = vcvt.s32.f32 %v617
        %v644 = vcvt.s32.f32 %v618
        %v645 = vcvt.s32.f32 %v619
        %v646 = vcvt.s32.f32 %v620
        %v647 = vcvt.s32.f32 %v621
        %v648 = vcvt.s32.f32 %v622
        %v649 = vcvt.s32.f32 %v623
        %v650 = vcvt.s32.f32 %v624
        %v651 = vcvt.s32.f32 %v625
        %v652 = vcvt.s32.f32 %v626
        %v653 = vcvt.s32.f32 %v627
        %v654 = vcvt.s32.f32 %v628
        %v655 = vcvt.s32.f32 %v629
        %v656 = vcvt.s32.f32 %v630
        %v657 = vcvt.s32.f32 %v631
        %v658 = vcvt.s32.f32 %v632
        %v659 = vcvt.s32.f32 %v633
        %v660 = vcvt.s32.f32 %v634
        %v661 = vcvt.s32.f32 %v635
        %v662 = vcvt.s32.f32 %v636
        %v663 = vcvt.s32.f32 %v637
        %v664 = vcvt.s32.f32 %v638
        %v665 = vcvt.s32.f32 %v639
        %v666 = vcvt.s32.f32 %v640
        %v667 = vcvt.s32.f32 %v641
        %v669 = vsel %vm357, %v667, 0
        %671 = vmatprep.subr.mxu0 0.0
        %672 = vmatpush1.msra.mxu0 %v642
        %673 = vmatprep.subr.mxu0 0.0
        %674 = vmatpush1.msra.mxu0 %v643
        %675 = vmatprep.subr.mxu0 0.0
        %676 = vmatpush1.msra.mxu0 %v644
        %677 = vmatprep.subr.mxu0 0.0
        %678 = vmatpush1.msra.mxu0 %v645
        %679 = vmatprep.subr.mxu0 0.0
        %680 = vmatpush1.msra.mxu0 %v646
        %681 = vmatprep.subr.mxu0 0.0
        %682 = vmatpush1.msra.mxu0 %v647
        %683 = vmatprep.subr.mxu0 0.0
        %684 = vmatpush1.msra.mxu0 %v648
        %685 = vmatprep.subr.mxu0 0.0
        %686 = vmatpush1.msra.mxu0 %v649
        %687 = vmatprep.subr.mxu0 0.0
        %688 = vmatpush1.msra.mxu0 %v650
        %689 = vmatprep.subr.mxu0 0.0
        %690 = vmatpush1.msra.mxu0 %v651
        %691 = vmatprep.subr.mxu0 0.0
        %692 = vmatpush1.msra.mxu0 %v652
        %693 = vmatprep.subr.mxu0 0.0
        %694 = vmatpush1.msra.mxu0 %v653
        %695 = vmatprep.subr.mxu0 0.0
        %696 = vmatpush1.msra.mxu0 %v654
        %697 = vmatprep.subr.mxu0 0.0
        %698 = vmatpush1.msra.mxu0 %v655
        %699 = vmatprep.subr.mxu0 0.0
        %700 = vmatpush1.msra.mxu0 %v656
        %701 = vmatprep.subr.mxu0 0.0
        %702 = vmatpush1.msra.mxu0 %v657
        %703 = vmatprep.subr.mxu0 0.0
        %704 = vmatpush1.msra.mxu0 %v658
        %705 = vmatprep.subr.mxu0 0.0
        %706 = vmatpush1.msra.mxu0 %v659
        %707 = vmatprep.subr.mxu0 0.0
        %708 = vmatpush1.msra.mxu0 %v660
        %709 = vmatprep.subr.mxu0 0.0
        %710 = vmatpush1.msra.mxu0 %v661
        %711 = vmatprep.subr.mxu0 0.0
        %712 = vmatpush1.msra.mxu0 %v662
        %713 = vmatprep.subr.mxu0 0.0
        %714 = vmatpush1.msra.mxu0 %v663
        %715 = vmatprep.subr.mxu0 0.0
        %716 = vmatpush1.msra.mxu0 %v664
        %717 = vmatprep.subr.mxu0 0.0
        %718 = vmatpush1.msra.mxu0 %v665
        %719 = vmatprep.subr.mxu0 0.0
        %720 = vmatpush1.msra.mxu0 %v666
        %721 = vmatprep.subr.mxu0 0.0
        %722 = vmatpush1.msra.mxu0 %v669
        %723 = vmatprep.subr.mxu0 0.0
        %724 = vmatpush1.msra.mxu0 0.0
        %725 = vmatprep.subr.mxu0 0.0
        %726 = vmatpush1.msra.mxu0 0.0
        %727 = vmatprep.subr.mxu0 0.0
        %728 = vmatpush1.msra.mxu0 0.0
        %729 = vmatprep.subr.mxu0 0.0
        %730 = vmatpush1.msra.mxu0 0.0
        %731 = vmatprep.subr.mxu0 0.0
        %732 = vmatpush1.msra.mxu0 0.0
        %733 = vmatprep.subr.mxu0 0.0
        %734 = vmatpush1.msra.mxu0 0.0
        %735 = vmatprep.mubr.f32.mxu0 %v355
        %736 = vmatmul.mubr.f32.gmra.mrb[0].mxu0 %v241
        %v737 = vpop.f32.mrb[0].mxu0
        %v738 = vadd.f32 0.0, %v737
        %v739 = vpop.f32.mrb[0].mxu0
        %740 = vdwg.mxu0
        %v741 = vlaneseq
        %v742 = vshrl.u32 %v741, 7
        %v743 = vsub.s32 3, %v742
        %v744 = vrot.slane %v242, %v743
        %vm745 = vcmp.eq.s32.totalorder %v744, %v244
        %vm746 = vcmp.eq.s32.totalorder %v744, %v245
        %vm747 = vcmp.eq.s32.totalorder %v744, %v246
        %vm748 = vcmp.eq.s32.totalorder %v744, %v247
        %vm749 = vcmp.eq.s32.totalorder %v744, %v248
        %vm750 = vcmp.eq.s32.totalorder %v744, %v249
        %vm751 = vcmp.eq.s32.totalorder %v744, %v250
        %vm752 = vcmp.eq.s32.totalorder %v744, %v251
        %vm753 = vcmp.eq.s32.totalorder %v744, %v252
        %vm754 = vcmp.eq.s32.totalorder %v744, %v253
        %vm755 = vcmp.eq.s32.totalorder %v744, %v254
        %vm756 = vcmp.eq.s32.totalorder %v744, %v255
        %vm757 = vcmp.eq.s32.totalorder %v744, %v256
        %vm758 = vcmp.eq.s32.totalorder %v744, %v257
        %vm759 = vcmp.eq.s32.totalorder %v744, %v258
        %vm760 = vcmp.eq.s32.totalorder %v744, %v259
        %vm761 = vcmp.eq.s32.totalorder %v744, %v260
        %vm762 = vcmp.eq.s32.totalorder %v744, %v261
        %vm763 = vcmp.eq.s32.totalorder %v744, %v262
        %vm764 = vcmp.eq.s32.totalorder %v744, %v263
        %vm765 = vcmp.eq.s32.totalorder %v744, %v264
        %vm766 = vcmp.eq.s32.totalorder %v744, %v265
        %vm767 = vcmp.eq.s32.totalorder %v744, %v266
        %vm768 = vcmp.eq.s32.totalorder %v744, %v267
        %vm769 = vcmp.eq.s32.totalorder %v744, %v268
        %vm770 = vcmp.eq.s32.totalorder %v744, %v269
        %v771 = vsel %vm745, 1, 0
        %v772 = vsel %vm746, 1, 0
        %v773 = vsel %vm747, 1, 0
        %v774 = vsel %vm748, 1, 0
        %v775 = vsel %vm749, 1, 0
        %v776 = vsel %vm750, 1, 0
        %v777 = vsel %vm751, 1, 0
        %v778 = vsel %vm752, 1, 0
        %v779 = vsel %vm753, 1, 0
        %v780 = vsel %vm754, 1, 0
        %v781 = vsel %vm755, 1, 0
        %v782 = vsel %vm756, 1, 0
        %v783 = vsel %vm757, 1, 0
        %v784 = vsel %vm758, 1, 0
        %v785 = vsel %vm759, 1, 0
        %v786 = vsel %vm760, 1, 0
        %v787 = vsel %vm761, 1, 0
        %v788 = vsel %vm762, 1, 0
        %v789 = vsel %vm763, 1, 0
        %v790 = vsel %vm764, 1, 0
        %v791 = vsel %vm765, 1, 0
        %v792 = vsel %vm766, 1, 0
        %v793 = vsel %vm767, 1, 0
        %v794 = vsel %vm768, 1, 0
        %v795 = vsel %vm769, 1, 0
        %v796 = vsel %vm770, 1, 0
        %v797 = vcvt.s32.f32 %v771
        %v798 = vcvt.s32.f32 %v772
        %v799 = vcvt.s32.f32 %v773
        %v800 = vcvt.s32.f32 %v774
        %v801 = vcvt.s32.f32 %v775
        %v802 = vcvt.s32.f32 %v776
        %v803 = vcvt.s32.f32 %v777
        %v804 = vcvt.s32.f32 %v778
        %v805 = vcvt.s32.f32 %v779
        %v806 = vcvt.s32.f32 %v780
        %v807 = vcvt.s32.f32 %v781
        %v808 = vcvt.s32.f32 %v782
        %v809 = vcvt.s32.f32 %v783
        %v810 = vcvt.s32.f32 %v784
        %v811 = vcvt.s32.f32 %v785
        %v812 = vcvt.s32.f32 %v786
        %v813 = vcvt.s32.f32 %v787
        %v814 = vcvt.s32.f32 %v788
        %v815 = vcvt.s32.f32 %v789
        %v816 = vcvt.s32.f32 %v790
        %v817 = vcvt.s32.f32 %v791
        %v818 = vcvt.s32.f32 %v792
        %v819 = vcvt.s32.f32 %v793
        %v820 = vcvt.s32.f32 %v794
        %v821 = vcvt.s32.f32 %v795
        %v822 = vcvt.s32.f32 %v796
        %v824 = vsel %vm357, %v822, 0
        %826 = vmatprep.subr.mxu0 0.0
        %827 = vmatpush1.msra.mxu0 %v797
        %828 = vmatprep.subr.mxu0 0.0
        %829 = vmatpush1.msra.mxu0 %v798
        %830 = vmatprep.subr.mxu0 0.0
        %831 = vmatpush1.msra.mxu0 %v799
        %832 = vmatprep.subr.mxu0 0.0
        %833 = vmatpush1.msra.mxu0 %v800
        %834 = vmatprep.subr.mxu0 0.0
        %835 = vmatpush1.msra.mxu0 %v801
        %836 = vmatprep.subr.mxu0 0.0
        %837 = vmatpush1.msra.mxu0 %v802
        %838 = vmatprep.subr.mxu0 0.0
        %839 = vmatpush1.msra.mxu0 %v803
        %840 = vmatprep.subr.mxu0 0.0
        %841 = vmatpush1.msra.mxu0 %v804
        %842 = vmatprep.subr.mxu0 0.0
        %843 = vmatpush1.msra.mxu0 %v805
        %844 = vmatprep.subr.mxu0 0.0
        %845 = vmatpush1.msra.mxu0 %v806
        %846 = vmatprep.subr.mxu0 0.0
        %847 = vmatpush1.msra.mxu0 %v807
        %848 = vmatprep.subr.mxu0 0.0
        %849 = vmatpush1.msra.mxu0 %v808
        %850 = vmatprep.subr.mxu0 0.0
        %851 = vmatpush1.msra.mxu0 %v809
        %852 = vmatprep.subr.mxu0 0.0
        %853 = vmatpush1.msra.mxu0 %v810
        %854 = vmatprep.subr.mxu0 0.0
        %855 = vmatpush1.msra.mxu0 %v811
        %856 = vmatprep.subr.mxu0 0.0
        %857 = vmatpush1.msra.mxu0 %v812
        %858 = vmatprep.subr.mxu0 0.0
        %859 = vmatpush1.msra.mxu0 %v813
        %860 = vmatprep.subr.mxu0 0.0
        %861 = vmatpush1.msra.mxu0 %v814
        %862 = vmatprep.subr.mxu0 0.0
        %863 = vmatpush1.msra.mxu0 %v815
        %864 = vmatprep.subr.mxu0 0.0
        %865 = vmatpush1.msra.mxu0 %v816
        %866 = vmatprep.subr.mxu0 0.0
        %867 = vmatpush1.msra.mxu0 %v817
        %868 = vmatprep.subr.mxu0 0.0
        %869 = vmatpush1.msra.mxu0 %v818
        %870 = vmatprep.subr.mxu0 0.0
        %871 = vmatpush1.msra.mxu0 %v819
        %872 = vmatprep.subr.mxu0 0.0
        %873 = vmatpush1.msra.mxu0 %v820
        %874 = vmatprep.subr.mxu0 0.0
        %875 = vmatpush1.msra.mxu0 %v821
        %876 = vmatprep.subr.mxu0 0.0
        %877 = vmatpush1.msra.mxu0 %v824
        %878 = vmatprep.subr.mxu0 0.0
        %879 = vmatpush1.msra.mxu0 0.0
        %880 = vmatprep.subr.mxu0 0.0
        %881 = vmatpush1.msra.mxu0 0.0
        %882 = vmatprep.subr.mxu0 0.0
        %883 = vmatpush1.msra.mxu0 0.0
        %884 = vmatprep.subr.mxu0 0.0
        %885 = vmatpush1.msra.mxu0 0.0
        %886 = vmatprep.subr.mxu0 0.0
        %887 = vmatpush1.msra.mxu0 0.0
        %888 = vmatprep.subr.mxu0 0.0
        %889 = vmatpush1.msra.mxu0 0.0
        %890 = vmatprep.mubr.f32.mxu0 %v355
        %891 = vmatmul.mubr.f32.gmra.mrb[0].mxu0 %v241
        %v892 = vpop.f32.mrb[0].mxu0
        %v893 = vadd.f32 0.0, %v892
        %v894 = vpop.f32.mrb[0].mxu0
        %895 = vdwg.mxu0
        %v896 = vlaneseq
        %v897 = vshrl.u32 %v896, 7
        %v898 = vsub.s32 4, %v897
        %v899 = vrot.slane %v242, %v898
        %vm900 = vcmp.eq.s32.totalorder %v899, %v244
        %vm901 = vcmp.eq.s32.totalorder %v899, %v245
        %vm902 = vcmp.eq.s32.totalorder %v899, %v246
        %vm903 = vcmp.eq.s32.totalorder %v899, %v247
        %vm904 = vcmp.eq.s32.totalorder %v899, %v248
        %vm905 = vcmp.eq.s32.totalorder %v899, %v249
        %vm906 = vcmp.eq.s32.totalorder %v899, %v250
        %vm907 = vcmp.eq.s32.totalorder %v899, %v251
        %vm908 = vcmp.eq.s32.totalorder %v899, %v252
        %vm909 = vcmp.eq.s32.totalorder %v899, %v253
        %vm910 = vcmp.eq.s32.totalorder %v899, %v254
        %vm911 = vcmp.eq.s32.totalorder %v899, %v255
        %vm912 = vcmp.eq.s32.totalorder %v899, %v256
        %vm913 = vcmp.eq.s32.totalorder %v899, %v257
        %vm914 = vcmp.eq.s32.totalorder %v899, %v258
        %vm915 = vcmp.eq.s32.totalorder %v899, %v259
        %vm916 = vcmp.eq.s32.totalorder %v899, %v260
        %vm917 = vcmp.eq.s32.totalorder %v899, %v261
        %vm918 = vcmp.eq.s32.totalorder %v899, %v262
        %vm919 = vcmp.eq.s32.totalorder %v899, %v263
        %vm920 = vcmp.eq.s32.totalorder %v899, %v264
        %vm921 = vcmp.eq.s32.totalorder %v899, %v265
        %vm922 = vcmp.eq.s32.totalorder %v899, %v266
        %vm923 = vcmp.eq.s32.totalorder %v899, %v267
        %vm924 = vcmp.eq.s32.totalorder %v899, %v268
        %vm925 = vcmp.eq.s32.totalorder %v899, %v269
        %v926 = vsel %vm900, 1, 0
        %v927 = vsel %vm901, 1, 0
        %v928 = vsel %vm902, 1, 0
        %v929 = vsel %vm903, 1, 0
        %v930 = vsel %vm904, 1, 0
        %v931 = vsel %vm905, 1, 0
        %v932 = vsel %vm906, 1, 0
        %v933 = vsel %vm907, 1, 0
        %v934 = vsel %vm908, 1, 0
        %v935 = vsel %vm909, 1, 0
        %v936 = vsel %vm910, 1, 0
        %v937 = vsel %vm911, 1, 0
        %v938 = vsel %vm912, 1, 0
        %v939 = vsel %vm913, 1, 0
        %v940 = vsel %vm914, 1, 0
        %v941 = vsel %vm915, 1, 0
        %v942 = vsel %vm916, 1, 0
        %v943 = vsel %vm917, 1, 0
        %v944 = vsel %vm918, 1, 0
        %v945 = vsel %vm919, 1, 0
        %v946 = vsel %vm920, 1, 0
        %v947 = vsel %vm921, 1, 0
        %v948 = vsel %vm922, 1, 0
        %v949 = vsel %vm923, 1, 0
        %v950 = vsel %vm924, 1, 0
        %v951 = vsel %vm925, 1, 0
        %v952 = vcvt.s32.f32 %v926
        %v953 = vcvt.s32.f32 %v927
        %v954 = vcvt.s32.f32 %v928
        %v955 = vcvt.s32.f32 %v929
        %v956 = vcvt.s32.f32 %v930
        %v957 = vcvt.s32.f32 %v931
        %v958 = vcvt.s32.f32 %v932
        %v959 = vcvt.s32.f32 %v933
        %v960 = vcvt.s32.f32 %v934
        %v961 = vcvt.s32.f32 %v935
        %v962 = vcvt.s32.f32 %v936
        %v963 = vcvt.s32.f32 %v937
        %v964 = vcvt.s32.f32 %v938
        %v965 = vcvt.s32.f32 %v939
        %v966 = vcvt.s32.f32 %v940
        %v967 = vcvt.s32.f32 %v941
        %v968 = vcvt.s32.f32 %v942
        %v969 = vcvt.s32.f32 %v943
        %v970 = vcvt.s32.f32 %v944
        %v971 = vcvt.s32.f32 %v945
        %v972 = vcvt.s32.f32 %v946
        %v973 = vcvt.s32.f32 %v947
        %v974 = vcvt.s32.f32 %v948
        %v975 = vcvt.s32.f32 %v949
        %v976 = vcvt.s32.f32 %v950
        %v977 = vcvt.s32.f32 %v951
        %v979 = vsel %vm357, %v977, 0
        %981 = vmatprep.subr.mxu0 0.0
        %982 = vmatpush1.msra.mxu0 %v952
        %983 = vmatprep.subr.mxu0 0.0
        %984 = vmatpush1.msra.mxu0 %v953
        %985 = vmatprep.subr.mxu0 0.0
        %986 = vmatpush1.msra.mxu0 %v954
        %987 = vmatprep.subr.mxu0 0.0
        %988 = vmatpush1.msra.mxu0 %v955
        %989 = vmatprep.subr.mxu0 0.0
        %990 = vmatpush1.msra.mxu0 %v956
        %991 = vmatprep.subr.mxu0 0.0
        %992 = vmatpush1.msra.mxu0 %v957
        %993 = vmatprep.subr.mxu0 0.0
        %994 = vmatpush1.msra.mxu0 %v958
        %995 = vmatprep.subr.mxu0 0.0
        %996 = vmatpush1.msra.mxu0 %v959
        %997 = vmatprep.subr.mxu0 0.0
        %998 = vmatpush1.msra.mxu0 %v960
        %999 = vmatprep.subr.mxu0 0.0
        %1000 = vmatpush1.msra.mxu0 %v961
        %1001 = vmatprep.subr.mxu0 0.0
        %1002 = vmatpush1.msra.mxu0 %v962
        %1003 = vmatprep.subr.mxu0 0.0
        %1004 = vmatpush1.msra.mxu0 %v963
        %1005 = vmatprep.subr.mxu0 0.0
        %1006 = vmatpush1.msra.mxu0 %v964
        %1007 = vmatprep.subr.mxu0 0.0
        %1008 = vmatpush1.msra.mxu0 %v965
        %1009 = vmatprep.subr.mxu0 0.0
        %1010 = vmatpush1.msra.mxu0 %v966
        %1011 = vmatprep.subr.mxu0 0.0
        %1012 = vmatpush1.msra.mxu0 %v967
        %1013 = vmatprep.subr.mxu0 0.0
        %1014 = vmatpush1.msra.mxu0 %v968
        %1015 = vmatprep.subr.mxu0 0.0
        %1016 = vmatpush1.msra.mxu0 %v969
        %1017 = vmatprep.subr.mxu0 0.0
        %1018 = vmatpush1.msra.mxu0 %v970
        %1019 = vmatprep.subr.mxu0 0.0
        %1020 = vmatpush1.msra.mxu0 %v971
        %1021 = vmatprep.subr.mxu0 0.0
        %1022 = vmatpush1.msra.mxu0 %v972
        %1023 = vmatprep.subr.mxu0 0.0
        %1024 = vmatpush1.msra.mxu0 %v973
        %1025 = vmatprep.subr.mxu0 0.0
        %1026 = vmatpush1.msra.mxu0 %v974
        %1027 = vmatprep.subr.mxu0 0.0
        %1028 = vmatpush1.msra.mxu0 %v975
        %1029 = vmatprep.subr.mxu0 0.0
        %1030 = vmatpush1.msra.mxu0 %v976
        %1031 = vmatprep.subr.mxu0 0.0
        %1032 = vmatpush1.msra.mxu0 %v979
        %1033 = vmatprep.subr.mxu0 0.0
        %1034 = vmatpush1.msra.mxu0 0.0
        %1035 = vmatprep.subr.mxu0 0.0
        %1036 = vmatpush1.msra.mxu0 0.0
        %1037 = vmatprep.subr.mxu0 0.0
        %1038 = vmatpush1.msra.mxu0 0.0
        %1039 = vmatprep.subr.mxu0 0.0
        %1040 = vmatpush1.msra.mxu0 0.0
        %1041 = vmatprep.subr.mxu0 0.0
        %1042 = vmatpush1.msra.mxu0 0.0
        %1043 = vmatprep.subr.mxu0 0.0
        %1044 = vmatpush1.msra.mxu0 0.0
        %1045 = vmatprep.mubr.f32.mxu0 %v355
        %1046 = vmatmul.mubr.f32.gmra.mrb[0].mxu0 %v241
        %v1047 = vpop.f32.mrb[0].mxu0
        %v1048 = vadd.f32 0.0, %v1047
        %v1049 = vpop.f32.mrb[0].mxu0
        %1050 = vdwg.mxu0
        %v1051 = vadd.f32 %v583, %v893
        %v1052 = vadd.f32 %v738, %v1048
        %v1053 = vsub.f32 %v583, %v893
        %v1054 = vand.u32 2147483647, %v1053
        %v1055 = vsub.f32 %v738, %v1048
        %v1056 = vand.u32 2147483647, %v1055
        %v1057 = vld [vmem:[%s2] sm:$0xff]
        %v1058 = vld [vmem:[%s3] sm:$0xff]
        %1060 = vset.pattern.permute.xlu0 0
        %1061 = vperm.xlu0 %1060, %v1058
        %v1062 = vpop.permute.xlu0 %1061
        %vm1064 = vcmask 31744
        %v1066 = vsel %vm1064, %v1057, 0
        %vm1068 = vcmask 1043456
        %v1070 = vsel %vm1068, %v428, 0
        %1072 = vmatprep.subr.mxu0 0.0
        %1073 = vmatpush1.msra.mxu0 %v1070
        %1074 = vmatprep.subr.mxu0 0.0
        %1075 = vmatpush1.msra.mxu0 0.0
        %1076 = vmatprep.subr.mxu0 0.0
        %1077 = vmatpush1.msra.mxu0 0.0
        %1078 = vmatprep.subr.mxu0 0.0
        %1079 = vmatpush1.msra.mxu0 0.0
        %1080 = vmatprep.subr.mxu0 0.0
        %1081 = vmatpush1.msra.mxu0 0.0
        %1082 = vmatprep.subr.mxu0 0.0
        %1083 = vmatpush1.msra.mxu0 0.0
        %1084 = vmatprep.subr.mxu0 0.0
        %1085 = vmatpush1.msra.mxu0 0.0
        %1086 = vmatprep.subr.mxu0 0.0
        %1087 = vmatpush1.msra.mxu0 0.0
        %1088 = vmatprep.subr.mxu0 0.0
        %1089 = vmatpush1.msra.mxu0 0.0
        %1090 = vmatprep.subr.mxu0 0.0
        %1091 = vmatpush1.msra.mxu0 0.0
        %1092 = vmatprep.subr.mxu0 0.0
        %1093 = vmatpush1.msra.mxu0 0.0
        %1094 = vmatprep.subr.mxu0 0.0
        %1095 = vmatpush1.msra.mxu0 0.0
        %1096 = vmatprep.subr.mxu0 0.0
        %1097 = vmatpush1.msra.mxu0 0.0
        %1098 = vmatprep.subr.mxu0 0.0
        %1099 = vmatpush1.msra.mxu0 0.0
        %1100 = vmatprep.subr.mxu0 0.0
        %1101 = vmatpush1.msra.mxu0 0.0
        %1102 = vmatprep.subr.mxu0 0.0
        %1103 = vmatpush1.msra.mxu0 0.0
        %1104 = vmatprep.subr.mxu0 0.0
        %1105 = vmatpush1.msra.mxu0 0.0
        %1106 = vmatprep.subr.mxu0 0.0
        %1107 = vmatpush1.msra.mxu0 0.0
        %1108 = vmatprep.subr.mxu0 0.0
        %1109 = vmatpush1.msra.mxu0 0.0
        %1110 = vmatprep.subr.mxu0 0.0
        %1111 = vmatpush1.msra.mxu0 0.0
        %1112 = vmatprep.subr.mxu0 0.0
        %1113 = vmatpush1.msra.mxu0 0.0
        %1114 = vmatprep.subr.mxu0 0.0
        %1115 = vmatpush1.msra.mxu0 0.0
        %1116 = vmatprep.subr.mxu0 0.0
        %1117 = vmatpush1.msra.mxu0 0.0
        %1118 = vmatprep.subr.mxu0 0.0
        %1119 = vmatpush1.msra.mxu0 0.0
        %1120 = vmatprep.subr.mxu0 0.0
        %1121 = vmatpush1.msra.mxu0 0.0
        %1122 = vmatprep.subr.mxu0 0.0
        %1123 = vmatpush1.msra.mxu0 0.0
        %1124 = vmatprep.subr.mxu0 0.0
        %1125 = vmatpush1.msra.mxu0 0.0
        %1126 = vmatprep.subr.mxu0 0.0
        %1127 = vmatpush1.msra.mxu0 0.0
        %1128 = vmatprep.subr.mxu0 0.0
        %1129 = vmatpush1.msra.mxu0 0.0
        %1130 = vmatprep.subr.mxu0 0.0
        %1131 = vmatpush1.msra.mxu0 0.0
        %1132 = vmatprep.subr.mxu0 0.0
        %1133 = vmatpush1.msra.mxu0 0.0
        %1134 = vmatprep.subr.mxu0 0.0
        %1135 = vmatpush1.msra.mxu0 0.0
        %1136 = vmatprep.mubr.f32.mxu0 0.0
        %1137 = vmatmul.mubr.f32.gmra.mrb[0].mxu0 %v1066
        %v1138 = vpop.f32.mrb[0].mxu0
        %v1139 = vadd.f32 %v1062, %v1138
        %v1140 = vpop.f32.mrb[0].mxu0
        %1141 = vdwg.mxu0
        %s1142 = scalar_lea.vmem %s2, 8
        %v1143 = vld [vmem:[%s1142] sm:$0xff]
        %v1145 = vsel %vm1064, %v1143, 0
        %v1148 = vsel %vm1068, %v1051, 0
        %1150 = vmatprep.subr.mxu0 0.0
        %1151 = vmatpush1.msra.mxu0 %v1148
        %1152 = vmatprep.subr.mxu0 0.0
        %1153 = vmatpush1.msra.mxu0 0.0
        %1154 = vmatprep.subr.mxu0 0.0
        %1155 = vmatpush1.msra.mxu0 0.0
        %1156 = vmatprep.subr.mxu0 0.0
        %1157 = vmatpush1.msra.mxu0 0.0
        %1158 = vmatprep.subr.mxu0 0.0
        %1159 = vmatpush1.msra.mxu0 0.0
        %1160 = vmatprep.subr.mxu0 0.0
        %1161 = vmatpush1.msra.mxu0 0.0
        %1162 = vmatprep.subr.mxu0 0.0
        %1163 = vmatpush1.msra.mxu0 0.0
        %1164 = vmatprep.subr.mxu0 0.0
        %1165 = vmatpush1.msra.mxu0 0.0
        %1166 = vmatprep.subr.mxu0 0.0
        %1167 = vmatpush1.msra.mxu0 0.0
        %1168 = vmatprep.subr.mxu0 0.0
        %1169 = vmatpush1.msra.mxu0 0.0
        %1170 = vmatprep.subr.mxu0 0.0
        %1171 = vmatpush1.msra.mxu0 0.0
        %1172 = vmatprep.subr.mxu0 0.0
        %1173 = vmatpush1.msra.mxu0 0.0
        %1174 = vmatprep.subr.mxu0 0.0
        %1175 = vmatpush1.msra.mxu0 0.0
        %1176 = vmatprep.subr.mxu0 0.0
        %1177 = vmatpush1.msra.mxu0 0.0
        %1178 = vmatprep.subr.mxu0 0.0
        %1179 = vmatpush1.msra.mxu0 0.0
        %1180 = vmatprep.subr.mxu0 0.0
        %1181 = vmatpush1.msra.mxu0 0.0
        %1182 = vmatprep.subr.mxu0 0.0
        %1183 = vmatpush1.msra.mxu0 0.0
        %1184 = vmatprep.subr.mxu0 0.0
        %1185 = vmatpush1.msra.mxu0 0.0
        %1186 = vmatprep.subr.mxu0 0.0
        %1187 = vmatpush1.msra.mxu0 0.0
        %1188 = vmatprep.subr.mxu0 0.0
        %1189 = vmatpush1.msra.mxu0 0.0
        %1190 = vmatprep.subr.mxu0 0.0
        %1191 = vmatpush1.msra.mxu0 0.0
        %1192 = vmatprep.subr.mxu0 0.0
        %1193 = vmatpush1.msra.mxu0 0.0
        %1194 = vmatprep.subr.mxu0 0.0
        %1195 = vmatpush1.msra.mxu0 0.0
        %1196 = vmatprep.subr.mxu0 0.0
        %1197 = vmatpush1.msra.mxu0 0.0
        %1198 = vmatprep.subr.mxu0 0.0
        %1199 = vmatpush1.msra.mxu0 0.0
        %1200 = vmatprep.subr.mxu0 0.0
        %1201 = vmatpush1.msra.mxu0 0.0
        %1202 = vmatprep.subr.mxu0 0.0
        %1203 = vmatpush1.msra.mxu0 0.0
        %1204 = vmatprep.subr.mxu0 0.0
        %1205 = vmatpush1.msra.mxu0 0.0
        %1206 = vmatprep.subr.mxu0 0.0
        %1207 = vmatpush1.msra.mxu0 0.0
        %1208 = vmatprep.subr.mxu0 0.0
        %1209 = vmatpush1.msra.mxu0 0.0
        %1210 = vmatprep.subr.mxu0 0.0
        %1211 = vmatpush1.msra.mxu0 0.0
        %1212 = vmatprep.subr.mxu0 0.0
        %1213 = vmatpush1.msra.mxu0 0.0
        %1214 = vmatprep.mubr.f32.mxu0 0.0
        %1215 = vmatmul.mubr.f32.gmra.mrb[0].mxu0 %v1145
        %v1216 = vpop.f32.mrb[0].mxu0
        %v1217 = vadd.f32 0.0, %v1216
        %v1218 = vpop.f32.mrb[0].mxu0
        %1219 = vdwg.mxu0
        %v1220 = vadd.f32 %v1139, %v1217
        %s1221 = scalar_lea.vmem %s2, 16
        %v1222 = vld [vmem:[%s1221] sm:$0xff]
        %v1224 = vsel %vm1064, %v1222, 0
        %v1227 = vsel %vm1068, %v1052, 0
        %1229 = vmatprep.subr.mxu0 0.0
        %1230 = vmatpush1.msra.mxu0 %v1227
        %1231 = vmatprep.subr.mxu0 0.0
        %1232 = vmatpush1.msra.mxu0 0.0
        %1233 = vmatprep.subr.mxu0 0.0
        %1234 = vmatpush1.msra.mxu0 0.0
        %1235 = vmatprep.subr.mxu0 0.0
        %1236 = vmatpush1.msra.mxu0 0.0
        %1237 = vmatprep.subr.mxu0 0.0
        %1238 = vmatpush1.msra.mxu0 0.0
        %1239 = vmatprep.subr.mxu0 0.0
        %1240 = vmatpush1.msra.mxu0 0.0
        %1241 = vmatprep.subr.mxu0 0.0
        %1242 = vmatpush1.msra.mxu0 0.0
        %1243 = vmatprep.subr.mxu0 0.0
        %1244 = vmatpush1.msra.mxu0 0.0
        %1245 = vmatprep.subr.mxu0 0.0
        %1246 = vmatpush1.msra.mxu0 0.0
        %1247 = vmatprep.subr.mxu0 0.0
        %1248 = vmatpush1.msra.mxu0 0.0
        %1249 = vmatprep.subr.mxu0 0.0
        %1250 = vmatpush1.msra.mxu0 0.0
        %1251 = vmatprep.subr.mxu0 0.0
        %1252 = vmatpush1.msra.mxu0 0.0
        %1253 = vmatprep.subr.mxu0 0.0
        %1254 = vmatpush1.msra.mxu0 0.0
        %1255 = vmatprep.subr.mxu0 0.0
        %1256 = vmatpush1.msra.mxu0 0.0
        %1257 = vmatprep.subr.mxu0 0.0
        %1258 = vmatpush1.msra.mxu0 0.0
        %1259 = vmatprep.subr.mxu0 0.0
        %1260 = vmatpush1.msra.mxu0 0.0
        %1261 = vmatprep.subr.mxu0 0.0
        %1262 = vmatpush1.msra.mxu0 0.0
        %1263 = vmatprep.subr.mxu0 0.0
        %1264 = vmatpush1.msra.mxu0 0.0
        %1265 = vmatprep.subr.mxu0 0.0
        %1266 = vmatpush1.msra.mxu0 0.0
        %1267 = vmatprep.subr.mxu0 0.0
        %1268 = vmatpush1.msra.mxu0 0.0
        %1269 = vmatprep.subr.mxu0 0.0
        %1270 = vmatpush1.msra.mxu0 0.0
        %1271 = vmatprep.subr.mxu0 0.0
        %1272 = vmatpush1.msra.mxu0 0.0
        %1273 = vmatprep.subr.mxu0 0.0
        %1274 = vmatpush1.msra.mxu0 0.0
        %1275 = vmatprep.subr.mxu0 0.0
        %1276 = vmatpush1.msra.mxu0 0.0
        %1277 = vmatprep.subr.mxu0 0.0
        %1278 = vmatpush1.msra.mxu0 0.0
        %1279 = vmatprep.subr.mxu0 0.0
        %1280 = vmatpush1.msra.mxu0 0.0
        %1281 = vmatprep.subr.mxu0 0.0
        %1282 = vmatpush1.msra.mxu0 0.0
        %1283 = vmatprep.subr.mxu0 0.0
        %1284 = vmatpush1.msra.mxu0 0.0
        %1285 = vmatprep.subr.mxu0 0.0
        %1286 = vmatpush1.msra.mxu0 0.0
        %1287 = vmatprep.subr.mxu0 0.0
        %1288 = vmatpush1.msra.mxu0 0.0
        %1289 = vmatprep.subr.mxu0 0.0
        %1290 = vmatpush1.msra.mxu0 0.0
        %1291 = vmatprep.subr.mxu0 0.0
        %1292 = vmatpush1.msra.mxu0 0.0
        %1293 = vmatprep.mubr.f32.mxu0 0.0
        %1294 = vmatmul.mubr.f32.gmra.mrb[0].mxu0 %v1224
        %v1295 = vpop.f32.mrb[0].mxu0
        %v1296 = vadd.f32 0.0, %v1295
        %v1297 = vpop.f32.mrb[0].mxu0
        %1298 = vdwg.mxu0
        %v1299 = vadd.f32 %v1220, %v1296
        %s1300 = scalar_lea.vmem %s2, 24
        %v1301 = vld [vmem:[%s1300] sm:$0xff]
        %v1303 = vsel %vm1064, %v1301, 0
        %v1306 = vsel %vm1068, %v1054, 0
        %1308 = vmatprep.subr.mxu0 0.0
        %1309 = vmatpush1.msra.mxu0 %v1306
        %1310 = vmatprep.subr.mxu0 0.0
        %1311 = vmatpush1.msra.mxu0 0.0
        %1312 = vmatprep.subr.mxu0 0.0
        %1313 = vmatpush1.msra.mxu0 0.0
        %1314 = vmatprep.subr.mxu0 0.0
        %1315 = vmatpush1.msra.mxu0 0.0
        %1316 = vmatprep.subr.mxu0 0.0
        %1317 = vmatpush1.msra.mxu0 0.0
        %1318 = vmatprep.subr.mxu0 0.0
        %1319 = vmatpush1.msra.mxu0 0.0
        %1320 = vmatprep.subr.mxu0 0.0
        %1321 = vmatpush1.msra.mxu0 0.0
        %1322 = vmatprep.subr.mxu0 0.0
        %1323 = vmatpush1.msra.mxu0 0.0
        %1324 = vmatprep.subr.mxu0 0.0
        %1325 = vmatpush1.msra.mxu0 0.0
        %1326 = vmatprep.subr.mxu0 0.0
        %1327 = vmatpush1.msra.mxu0 0.0
        %1328 = vmatprep.subr.mxu0 0.0
        %1329 = vmatpush1.msra.mxu0 0.0
        %1330 = vmatprep.subr.mxu0 0.0
        %1331 = vmatpush1.msra.mxu0 0.0
        %1332 = vmatprep.subr.mxu0 0.0
        %1333 = vmatpush1.msra.mxu0 0.0
        %1334 = vmatprep.subr.mxu0 0.0
        %1335 = vmatpush1.msra.mxu0 0.0
        %1336 = vmatprep.subr.mxu0 0.0
        %1337 = vmatpush1.msra.mxu0 0.0
        %1338 = vmatprep.subr.mxu0 0.0
        %1339 = vmatpush1.msra.mxu0 0.0
        %1340 = vmatprep.subr.mxu0 0.0
        %1341 = vmatpush1.msra.mxu0 0.0
        %1342 = vmatprep.subr.mxu0 0.0
        %1343 = vmatpush1.msra.mxu0 0.0
        %1344 = vmatprep.subr.mxu0 0.0
        %1345 = vmatpush1.msra.mxu0 0.0
        %1346 = vmatprep.subr.mxu0 0.0
        %1347 = vmatpush1.msra.mxu0 0.0
        %1348 = vmatprep.subr.mxu0 0.0
        %1349 = vmatpush1.msra.mxu0 0.0
        %1350 = vmatprep.subr.mxu0 0.0
        %1351 = vmatpush1.msra.mxu0 0.0
        %1352 = vmatprep.subr.mxu0 0.0
        %1353 = vmatpush1.msra.mxu0 0.0
        %1354 = vmatprep.subr.mxu0 0.0
        %1355 = vmatpush1.msra.mxu0 0.0
        %1356 = vmatprep.subr.mxu0 0.0
        %1357 = vmatpush1.msra.mxu0 0.0
        %1358 = vmatprep.subr.mxu0 0.0
        %1359 = vmatpush1.msra.mxu0 0.0
        %1360 = vmatprep.subr.mxu0 0.0
        %1361 = vmatpush1.msra.mxu0 0.0
        %1362 = vmatprep.subr.mxu0 0.0
        %1363 = vmatpush1.msra.mxu0 0.0
        %1364 = vmatprep.subr.mxu0 0.0
        %1365 = vmatpush1.msra.mxu0 0.0
        %1366 = vmatprep.subr.mxu0 0.0
        %1367 = vmatpush1.msra.mxu0 0.0
        %1368 = vmatprep.subr.mxu0 0.0
        %1369 = vmatpush1.msra.mxu0 0.0
        %1370 = vmatprep.subr.mxu0 0.0
        %1371 = vmatpush1.msra.mxu0 0.0
        %1372 = vmatprep.mubr.f32.mxu0 0.0
        %1373 = vmatmul.mubr.f32.gmra.mrb[0].mxu0 %v1303
        %v1374 = vpop.f32.mrb[0].mxu0
        %v1375 = vadd.f32 0.0, %v1374
        %v1376 = vpop.f32.mrb[0].mxu0
        %1377 = vdwg.mxu0
        %v1378 = vadd.f32 %v1299, %v1375
        %s1379 = scalar_lea.vmem %s2, 32
        %v1380 = vld [vmem:[%s1379] sm:$0xff]
        %v1382 = vsel %vm1064, %v1380, 0
        %v1385 = vsel %vm1068, %v1056, 0
        %1387 = vmatprep.subr.mxu0 0.0
        %1388 = vmatpush1.msra.mxu0 %v1385
        %1389 = vmatprep.subr.mxu0 0.0
        %1390 = vmatpush1.msra.mxu0 0.0
        %1391 = vmatprep.subr.mxu0 0.0
        %1392 = vmatpush1.msra.mxu0 0.0
        %1393 = vmatprep.subr.mxu0 0.0
        %1394 = vmatpush1.msra.mxu0 0.0
        %1395 = vmatprep.subr.mxu0 0.0
        %1396 = vmatpush1.msra.mxu0 0.0
        %1397 = vmatprep.subr.mxu0 0.0
        %1398 = vmatpush1.msra.mxu0 0.0
        %1399 = vmatprep.subr.mxu0 0.0
        %1400 = vmatpush1.msra.mxu0 0.0
        %1401 = vmatprep.subr.mxu0 0.0
        %1402 = vmatpush1.msra.mxu0 0.0
        %1403 = vmatprep.subr.mxu0 0.0
        %1404 = vmatpush1.msra.mxu0 0.0
        %1405 = vmatprep.subr.mxu0 0.0
        %1406 = vmatpush1.msra.mxu0 0.0
        %1407 = vmatprep.subr.mxu0 0.0
        %1408 = vmatpush1.msra.mxu0 0.0
        %1409 = vmatprep.subr.mxu0 0.0
        %1410 = vmatpush1.msra.mxu0 0.0
        %1411 = vmatprep.subr.mxu0 0.0
        %1412 = vmatpush1.msra.mxu0 0.0
        %1413 = vmatprep.subr.mxu0 0.0
        %1414 = vmatpush1.msra.mxu0 0.0
        %1415 = vmatprep.subr.mxu0 0.0
        %1416 = vmatpush1.msra.mxu0 0.0
        %1417 = vmatprep.subr.mxu0 0.0
        %1418 = vmatpush1.msra.mxu0 0.0
        %1419 = vmatprep.subr.mxu0 0.0
        %1420 = vmatpush1.msra.mxu0 0.0
        %1421 = vmatprep.subr.mxu0 0.0
        %1422 = vmatpush1.msra.mxu0 0.0
        %1423 = vmatprep.subr.mxu0 0.0
        %1424 = vmatpush1.msra.mxu0 0.0
        %1425 = vmatprep.subr.mxu0 0.0
        %1426 = vmatpush1.msra.mxu0 0.0
        %1427 = vmatprep.subr.mxu0 0.0
        %1428 = vmatpush1.msra.mxu0 0.0
        %1429 = vmatprep.subr.mxu0 0.0
        %1430 = vmatpush1.msra.mxu0 0.0
        %1431 = vmatprep.subr.mxu0 0.0
        %1432 = vmatpush1.msra.mxu0 0.0
        %1433 = vmatprep.subr.mxu0 0.0
        %1434 = vmatpush1.msra.mxu0 0.0
        %1435 = vmatprep.subr.mxu0 0.0
        %1436 = vmatpush1.msra.mxu0 0.0
        %1437 = vmatprep.subr.mxu0 0.0
        %1438 = vmatpush1.msra.mxu0 0.0
        %1439 = vmatprep.subr.mxu0 0.0
        %1440 = vmatpush1.msra.mxu0 0.0
        %1441 = vmatprep.subr.mxu0 0.0
        %1442 = vmatpush1.msra.mxu0 0.0
        %1443 = vmatprep.subr.mxu0 0.0
        %1444 = vmatpush1.msra.mxu0 0.0
        %1445 = vmatprep.subr.mxu0 0.0
        %1446 = vmatpush1.msra.mxu0 0.0
        %1447 = vmatprep.subr.mxu0 0.0
        %1448 = vmatpush1.msra.mxu0 0.0
        %1449 = vmatprep.subr.mxu0 0.0
        %1450 = vmatpush1.msra.mxu0 0.0
        %1451 = vmatprep.mubr.f32.mxu0 0.0
        %1452 = vmatmul.mubr.f32.gmra.mrb[0].mxu0 %v1382
        %v1453 = vpop.f32.mrb[0].mxu0
        %v1454 = vadd.f32 0.0, %v1453
        %v1455 = vpop.f32.mrb[0].mxu0
        %1456 = vdwg.mxu0
        %v1457 = vadd.f32 %v1378, %v1454
        %1458 = vst [vmem:[%s227] sm:$0xff] %v1457
        %s1459 = sand.u32 %s136, 1
        %s1460 = scalar_lea.sflag [#allocation3], %s1459
        %s1461 = sand.u32 %s136, 1
        %s1462 = smul.addr %s1461, 8
        %s1463 = scalar_lea.vmem [#allocation2], %s1462
        // Predicated region
        $region37: #{tpu_custom_call.1} parent=35 // pred_check
          %p1464 = pneg %p146
        $region38: #{tpu_custom_call.1} parent=35 // pred_check_branch
          %1466 = sbr.rel (%p1464) target = $region40
        $region39: #{tpu_custom_call.1} parent=35 // pred_region
          %s1468 = ssub.s32 128, 128
          %1469 = vsyncadd %s1460, %s1468
          %s1470 = smul.addr %s22, 2
          %s1471 = sadd.s32 %s23, %s1470
          %s1472 = smul.addr %s1471, 128
          %s1473 = scalar_lea.hbm %s4, %s1472
          %s1475 = sshll.u32 %s1463, 4
          %s1476 = int_to_ptr.vmem [resolvable:$true] %s1475
          %1478 = dma.vmem_to_hbm [thread:$0]  %s1476, 128, %s1473, %s1460
        $region40: #{tpu_custom_call.1} parent=35 // pred_fallthru
          _
      $region36: #{tpu_custom_call.1} parent=5 // pred_fallthru
        _
      %p1479 = scmp.le.s32.totalorder 2, %s13
      // Predicated region
      $region41: #{tpu_custom_call.1} parent=5 // pred_check
        %p1480 = pneg %p1479
      $region42: #{tpu_custom_call.1} parent=5 // pred_check_branch
        %1482 = sbr.rel (%p1480) target = $region44
      $region43: #{tpu_custom_call.1} parent=5 // pred_region
        %s1483 = ssub.s32 %s13, 2
        // Predicated region
        $region45: #{tpu_custom_call.1} parent=43 // pred_check
          %p1484 = pneg %p152
        $region46: #{tpu_custom_call.1} parent=43 // pred_check_branch
          %1486 = sbr.rel (%p1484) target = $region48
        $region47: #{tpu_custom_call.1} parent=43 // pred_region
          %s1487 = sand.u32 %s137, 1
          %s1488 = scalar_lea.sflag [#allocation3], %s1487
          %s1489 = sand.u32 %s137, 1
          %s1490 = smul.addr %s1489, 8
          %s1491 = scalar_lea.vmem [#allocation2], %s1490
          %1492 = dma.done %s1488, 128
        $region48: #{tpu_custom_call.1} parent=43 // pred_fallthru
          _
      $region44: #{tpu_custom_call.1} parent=5 // pred_fallthru
        _
    $region6: #{tpu_custom_call.1} parent=1 // loop_footer
      %s17 = sadd.s32 1, %s13
    $region7: #{tpu_custom_call.1} parent=1 // loop_footer_branch
      %12 = sbr.rel target = $region3
    $region8: #{tpu_custom_call.1} parent=1 // loop_exit
      _
    %1493 = vsyncpa [#allocation3], 1
    %s1494 = scalar_lea.sflag [#allocation3], 1
    %1495 = vsyncpa %s1494, 1

</llo_original>
